<compile_context>
chip_gen: v6e
topology: v6e:2x2x1
jax: 0.10.0
libtpu: 0.0.40
codegen_flags: <defaults>
</compile_context>

<pallas_src>
import functools

import numpy as np
import jax
import jax.numpy as jnp
from jax import lax
from jax.experimental import pallas as pl
from jax.experimental.pallas import tpu as pltpu

EPS = 1e-5          # BatchNorm2d default eps
NEG_SLOPE = 0.2     # LeakyReLU negative slope


# ----------------------------------------------------------------------------
# Single fused kernel: conv1 -> bn1 -> lrelu1 -> conv2 -> bn2 -> lrelu2 -> avgpool(2)
# ----------------------------------------------------------------------------
def _agent_block_kernel(x_ref, w1_ref, w2_ref, g1_ref, be1_ref, g2_ref, be2_ref,
                        mask_ref, pool_ref, out_ref, patch1_ref, patch2_ref, *, W, L):
    inv_cnt = jnp.float32(1.0 / L)

    def conv3x3(x, w_ref, patch_ref):
        # im2col via 9 XLU lane-rolls of the (C, L) activation, masked at image borders,
        # stored in place into the (9*C, L) patch scratch, then ONE MXU matmul.
        C = x.shape[0]
        k = 0
        for dy in (-1, 0, 1):
            for dx in (-1, 0, 1):
                d = dy * W + dx
                if d == 0:
                    patch_ref[k * C:(k + 1) * C, :] = x
                else:
                    shifted = pltpu.roll(x, shift=(-d) % L, axis=1)   # value at pixel p+d
                    # Precomputed mask zeroes lanes where (row+dy, col+dx) leaves the image
                    # (this also kills every lane the circular wrap would corrupt).
                    patch_ref[k * C:(k + 1) * C, :] = shifted * mask_ref[k:k + 1, :]
                k += 1
        return jnp.dot(w_ref[...], patch_ref[...], preferred_element_type=jnp.float32)

    def bn_lrelu(y, gamma, beta):
        # Training-mode BatchNorm (biased variance), single-pass stats, fused LeakyReLU.
        s1 = jnp.sum(y, axis=1, keepdims=True)
        s2 = jnp.sum(y * y, axis=1, keepdims=True)
        mean = s1 * inv_cnt
        var = s2 * inv_cnt - mean * mean
        scale = gamma * lax.rsqrt(var + jnp.float32(EPS))
        h = (y - mean) * scale + beta
        return jnp.where(h >= 0, h, jnp.float32(NEG_SLOPE) * h)

    # conv1 -> bn1 -> lrelu1
    h1 = bn_lrelu(conv3x3(x_ref[...], w1_ref, patch1_ref), g1_ref[...], be1_ref[...])
    # conv2 -> bn2 -> lrelu2
    h2 = bn_lrelu(conv3x3(h1, w2_ref, patch2_ref), g2_ref[...], be2_ref[...])
    # 2x2 average pool: one MXU matmul against the precomputed lane-selection matrix.
    out_ref[...] = jnp.dot(h2, pool_ref[...], preferred_element_type=jnp.float32)


# ----------------------------------------------------------------------------
# Host-side parameter / layout preparation (static-shape numpy + tiny XLA ops under jit)
# ----------------------------------------------------------------------------
def _round_up(x, m):
    return (x + m - 1) // m * m


def _prep_conv_weight(w_oihw, cin_p, cout_p):
    """OIHW conv weight -> (Cout_p, 9*Cin_p) matmul weight, rows ordered (ky, kx, ci)."""
    cout, cin, kh, kw = w_oihw.shape
    w = jnp.transpose(w_oihw, (2, 3, 1, 0)).astype(jnp.float32)          # (kh, kw, Cin, Cout)
    w = jnp.pad(w, ((0, 0), (0, 0), (0, cin_p - cin), (0, cout_p - cout)))
    return w.reshape(kh * kw * cin_p, cout_p).T                          # (Cout_p, 9*Cin_p)


def _prep_bn_param(v, cout_p, pad_value):
    v = v.astype(jnp.float32)
    v = jnp.pad(v, (0, cout_p - v.shape[0]), constant_values=pad_value)
    return v.reshape(cout_p, 1)


def _make_tap_masks(N, H, W):
    """(9, N*H*W) f32 masks: 1.0 where the (dy,dx)-shifted pixel stays inside its image."""
    HW = H * W
    L = N * HW
    lin = np.arange(L)
    row = (lin % HW) // W
    col = lin % W
    masks = np.empty((9, L), np.float32)
    k = 0
    for dy in (-1, 0, 1):
        for dx in (-1, 0, 1):
            m = np.ones(L, bool)
            if dy < 0:
                m &= row >= -dy
            elif dy > 0:
                m &= row < H - dy
            if dx < 0:
                m &= col >= -dx
            elif dx > 0:
                m &= col < W - dx
            masks[k] = m.astype(np.float32)
            k += 1
    return masks


def _make_pool_matrix(N, H, W):
    """(L, Q) f32 selection matrix implementing AvgPool2d(2) as a single matmul."""
    HW = H * W
    Ho, Wo = H // 2, W // 2
    L = N * HW
    Q = N * Ho * Wo
    lin = np.arange(L)
    n = lin // HW
    r = (lin % HW) // W
    c = lin % W
    q = (n * Ho + r // 2) * Wo + (c // 2)
    pool = np.zeros((L, Q), np.float32)
    pool[lin, q] = 0.25
    return pool


@jax.jit
def agent_conv_block_bn(x_nchw, params):
    N, Cin, H, W = x_nchw.shape
    Cout = params["w1"].shape[0]
    assert H % 2 == 0 and W % 2 == 0, "AvgPool2d(2) expects even spatial dims"
    Cin_p = _round_up(Cin, 8)
    Cout_p = _round_up(Cout, 8)
    L = N * H * W
    Q = N * (H // 2) * (W // 2)
    assert L % 128 == 0 and Q % 128 == 0, "N*H*W must keep the lane dim 128-aligned"

    # Honest single-grid-step working-set estimate (inputs + output + scratch + live temps).
    # Toy shapes are far below even v5e's 16 MiB default scoped-VMEM limit.
    working_set = 4 * (
        Cin_p * L                                   # activation input
        + 9 * Cin_p * Cout_p + 9 * Cout_p * Cout_p  # conv weights
        + 4 * Cout_p                                # BN params
        + 9 * L                                     # tap masks
        + L * Q                                     # pool matrix
        + Cout_p * Q                                # output
        + 9 * Cin_p * L + 9 * Cout_p * L            # im2col scratch slabs
        + 8 * Cout_p * L)                           # h1/h2, rolled taps, BN temporaries
    assert working_set < 12 * 1024 * 1024, "inputs too large for the fused whole-batch kernel"

    # Lane-dense layout: channels (padded to a multiple of 8) in sublanes, pixels in lanes.
    x = jnp.pad(x_nchw.astype(jnp.float32), ((0, 0), (0, Cin_p - Cin), (0, 0), (0, 0)))
    x2d = jnp.transpose(x, (1, 0, 2, 3)).reshape(Cin_p, L)

    w1m = _prep_conv_weight(params["w1"], Cin_p, Cout_p)
    w2m = _prep_conv_weight(params["w2"], Cout_p, Cout_p)
    g1 = _prep_bn_param(params["g1"], Cout_p, 1.0)
    be1 = _prep_bn_param(params["beta1"], Cout_p, 0.0)
    g2 = _prep_bn_param(params["g2"], Cout_p, 1.0)
    be2 = _prep_bn_param(params["beta2"], Cout_p, 0.0)
    # Conv biases params["b1"] / params["b2"] are intentionally unused: training-mode BN
    # subtracts the per-channel batch mean, which cancels a constant bias exactly.
    masks = jnp.asarray(_make_tap_masks(N, H, W))        # host-built, constant under jit
    pool = jnp.asarray(_make_pool_matrix(N, H, W))       # host-built, constant under jit

    out2d = pl.pallas_call(
        functools.partial(_agent_block_kernel, W=W, L=L),
        out_shape=jax.ShapeDtypeStruct((Cout_p, Q), jnp.float32),
        in_specs=[pl.BlockSpec(memory_space=pltpu.MemorySpace.VMEM)] * 9,
        out_specs=pl.BlockSpec(memory_space=pltpu.MemorySpace.VMEM),
        scratch_shapes=[pltpu.VMEM((9 * Cin_p, L), jnp.float32),
                        pltpu.VMEM((9 * Cout_p, L), jnp.float32)],
    )(x2d, w1m, w2m, g1, be1, g2, be2, masks, pool)

    out = out2d.reshape(Cout_p, N, H // 2, W // 2)[:Cout]
    return jnp.transpose(out, (1, 0, 2, 3))                              # -> NCHW


# ----------------------------------------------------------------------------
# Pure-JAX reference mirroring PyTorch semantics (training-mode BN, biased variance).
# ----------------------------------------------------------------------------
def reference(x, w1, b1, g1, be1, w2, b2, g2, be2):
    def conv(x, w, b):
        y = lax.conv_general_dilated(x, w, (1, 1), ((1, 1), (1, 1)),
                                     dimension_numbers=("NCHW", "OIHW", "NCHW"))
        return y + b[None, :, None, None]

    def bn(y, g, be):
        m = y.mean(axis=(0, 2, 3), keepdims=True)
        v = y.var(axis=(0, 2, 3), keepdims=True)
        return (y - m) / jnp.sqrt(v + EPS) * g[None, :, None, None] + be[None, :, None, None]

    def lrelu(h):
        return jnp.where(h >= 0, h, NEG_SLOPE * h)

    h = lrelu(bn(conv(x, w1, b1), g1, be1))
    h = lrelu(bn(conv(h, w2, b2), g2, be2))
    N, C, Hh, Ww = h.shape
    return h.reshape(N, C, Hh // 2, 2, Ww // 2, 2).mean(axis=(3, 5))


if __name__ == "__main__":
    key = jax.random.PRNGKey(0)
    N, nin, nout, H, W = 2, 4, 8, 16, 16
    ks = jax.random.split(key, 9)
    x = jax.random.normal(ks[0], (N, nin, H, W), jnp.float32)

    # Deterministic synthetic parameters (shapes match the PyTorch module, OIHW weights).
    w1 = 0.1 * jax.random.normal(ks[1], (nout, nin, 3, 3), jnp.float32)
    b1 = 0.1 * jax.random.normal(ks[2], (nout,), jnp.float32)
    g1 = 1.0 + 0.1 * jax.random.normal(ks[3], (nout,), jnp.float32)
    be1 = 0.1 * jax.random.normal(ks[4], (nout,), jnp.float32)
    w2 = 0.1 * jax.random.normal(ks[5], (nout, nout, 3, 3), jnp.float32)
    b2 = 0.1 * jax.random.normal(ks[6], (nout,), jnp.float32)
    g2 = 1.0 + 0.1 * jax.random.normal(ks[7], (nout,), jnp.float32)
    be2 = 0.1 * jax.random.normal(ks[8], (nout,), jnp.float32)

    params = dict(w1=w1, b1=b1, g1=g1, beta1=be1,
                  w2=w2, b2=b2, g2=g2, beta2=be2)

    out = jax.block_until_ready(agent_conv_block_bn(x, params))

    ref = reference(x, w1, b1, g1, be1, w2, b2, g2, be2)
    assert out.shape == (N, nout, H // 2, W // 2), out.shape
    err = float(jnp.max(jnp.abs(out - ref)))
    assert err < 1e-3, f"max abs error {err}"
    print("KERNEL_OK")
</pallas_src>

<mosaic_0001>
module attributes {stable_mosaic.version = 11 : i64} {
  func.func @_agent_block_kernel(%arg0: memref<8x512xf32, #tpu.memory_space<vmem>>, %arg1: memref<8x72xf32, #tpu.memory_space<vmem>>, %arg2: memref<8x72xf32, #tpu.memory_space<vmem>>, %arg3: memref<8x1xf32, #tpu.memory_space<vmem>>, %arg4: memref<8x1xf32, #tpu.memory_space<vmem>>, %arg5: memref<8x1xf32, #tpu.memory_space<vmem>>, %arg6: memref<8x1xf32, #tpu.memory_space<vmem>>, %arg7: memref<9x512xf32, #tpu.memory_space<vmem>>, %arg8: memref<512x128xf32, #tpu.memory_space<vmem>>, %arg9: memref<8x128xf32, #tpu.memory_space<vmem>>, %arg10: memref<72x512xf32, #tpu.memory_space<vmem>>, %arg11: memref<72x512xf32, #tpu.memory_space<vmem>>) attributes {dimension_semantics = [], scalar_prefetch = 0 : i64, scratch_operands = 2 : i64, tpu.core_type = #tpu.core_type<tc>} {
    %c0 = arith.constant 0 : index
    %c0_0 = arith.constant 0 : index
    %0 = vector.load %arg0[%c0, %c0_0] : memref<8x512xf32, #tpu.memory_space<vmem>>, vector<8x512xf32>
    %c17_i32 = arith.constant 17 : i32
    %1 = tpu.dynamic_rotate %0 by %c17_i32 dim 1 : vector<8x512xf32>, i32 -> vector<8x512xf32>
    %c0_1 = arith.constant 0 : index
    %c0_2 = arith.constant 0 : index
    %2 = vector.load %arg7[%c0_1, %c0_2] : memref<9x512xf32, #tpu.memory_space<vmem>>, vector<1x512xf32>
    %3 = vector.broadcast %2 : vector<1x512xf32> to vector<8x512xf32>
    %4 = arith.mulf %1, %3 : vector<8x512xf32>
    %c0_3 = arith.constant 0 : index
    %c0_4 = arith.constant 0 : index
    %5 = vector.load %arg10[%c0_3, %c0_4] : memref<72x512xf32, #tpu.memory_space<vmem>>, vector<8x512xf32>
    tpu.vector_store %arg10[%c0_3, %c0_4], %4 {strides = array<i32>} : memref<72x512xf32, #tpu.memory_space<vmem>>, vector<8x512xf32>,
    %c16_i32 = arith.constant 16 : i32
    %6 = tpu.dynamic_rotate %0 by %c16_i32 dim 1 : vector<8x512xf32>, i32 -> vector<8x512xf32>
    %c1 = arith.constant 1 : index
    %c0_5 = arith.constant 0 : index
    %7 = vector.load %arg7[%c1, %c0_5] : memref<9x512xf32, #tpu.memory_space<vmem>>, vector<1x512xf32>
    %8 = vector.broadcast %7 : vector<1x512xf32> to vector<8x512xf32>
    %9 = arith.mulf %6, %8 : vector<8x512xf32>
    %c8 = arith.constant 8 : index
    %c0_6 = arith.constant 0 : index
    %10 = vector.load %arg10[%c8, %c0_6] : memref<72x512xf32, #tpu.memory_space<vmem>>, vector<8x512xf32>
    tpu.vector_store %arg10[%c8, %c0_6], %9 {strides = array<i32>} : memref<72x512xf32, #tpu.memory_space<vmem>>, vector<8x512xf32>,
    %c15_i32 = arith.constant 15 : i32
    %11 = tpu.dynamic_rotate %0 by %c15_i32 dim 1 : vector<8x512xf32>, i32 -> vector<8x512xf32>
    %c2 = arith.constant 2 : index
    %c0_7 = arith.constant 0 : index
    %12 = vector.load %arg7[%c2, %c0_7] : memref<9x512xf32, #tpu.memory_space<vmem>>, vector<1x512xf32>
    %13 = vector.broadcast %12 : vector<1x512xf32> to vector<8x512xf32>
    %14 = arith.mulf %11, %13 : vector<8x512xf32>
    %c16 = arith.constant 16 : index
    %c0_8 = arith.constant 0 : index
    %15 = vector.load %arg10[%c16, %c0_8] : memref<72x512xf32, #tpu.memory_space<vmem>>, vector<8x512xf32>
    tpu.vector_store %arg10[%c16, %c0_8], %14 {strides = array<i32>} : memref<72x512xf32, #tpu.memory_space<vmem>>, vector<8x512xf32>,
    %c1_i32 = arith.constant 1 : i32
    %16 = tpu.dynamic_rotate %0 by %c1_i32 dim 1 : vector<8x512xf32>, i32 -> vector<8x512xf32>
    %c3 = arith.constant 3 : index
    %c0_9 = arith.constant 0 : index
    %17 = vector.load %arg7[%c3, %c0_9] : memref<9x512xf32, #tpu.memory_space<vmem>>, vector<1x512xf32>
    %18 = vector.broadcast %17 : vector<1x512xf32> to vector<8x512xf32>
    %19 = arith.mulf %16, %18 : vector<8x512xf32>
    %c24 = arith.constant 24 : index
    %c0_10 = arith.constant 0 : index
    %20 = vector.load %arg10[%c24, %c0_10] : memref<72x512xf32, #tpu.memory_space<vmem>>, vector<8x512xf32>
    tpu.vector_store %arg10[%c24, %c0_10], %19 {strides = array<i32>} : memref<72x512xf32, #tpu.memory_space<vmem>>, vector<8x512xf32>,
    %c32 = arith.constant 32 : index
    %c0_11 = arith.constant 0 : index
    %21 = vector.load %arg10[%c32, %c0_11] : memref<72x512xf32, #tpu.memory_space<vmem>>, vector<8x512xf32>
    tpu.vector_store %arg10[%c32, %c0_11], %0 {strides = array<i32>} : memref<72x512xf32, #tpu.memory_space<vmem>>, vector<8x512xf32>,
    %c511_i32 = arith.constant 511 : i32
    %22 = tpu.dynamic_rotate %0 by %c511_i32 dim 1 : vector<8x512xf32>, i32 -> vector<8x512xf32>
    %c5 = arith.constant 5 : index
    %c0_12 = arith.constant 0 : index
    %23 = vector.load %arg7[%c5, %c0_12] : memref<9x512xf32, #tpu.memory_space<vmem>>, vector<1x512xf32>
    %24 = vector.broadcast %23 : vector<1x512xf32> to vector<8x512xf32>
    %25 = arith.mulf %22, %24 : vector<8x512xf32>
    %c40 = arith.constant 40 : index
    %c0_13 = arith.constant 0 : index
    %26 = vector.load %arg10[%c40, %c0_13] : memref<72x512xf32, #tpu.memory_space<vmem>>, vector<8x512xf32>
    tpu.vector_store %arg10[%c40, %c0_13], %25 {strides = array<i32>} : memref<72x512xf32, #tpu.memory_space<vmem>>, vector<8x512xf32>,
    %c497_i32 = arith.constant 497 : i32
    %27 = tpu.dynamic_rotate %0 by %c497_i32 dim 1 : vector<8x512xf32>, i32 -> vector<8x512xf32>
    %c6 = arith.constant 6 : index
    %c0_14 = arith.constant 0 : index
    %28 = vector.load %arg7[%c6, %c0_14] : memref<9x512xf32, #tpu.memory_space<vmem>>, vector<1x512xf32>
    %29 = vector.broadcast %28 : vector<1x512xf32> to vector<8x512xf32>
    %30 = arith.mulf %27, %29 : vector<8x512xf32>
    %c48 = arith.constant 48 : index
    %c0_15 = arith.constant 0 : index
    %31 = vector.load %arg10[%c48, %c0_15] : memref<72x512xf32, #tpu.memory_space<vmem>>, vector<8x512xf32>
    tpu.vector_store %arg10[%c48, %c0_15], %30 {strides = array<i32>} : memref<72x512xf32, #tpu.memory_space<vmem>>, vector<8x512xf32>,
    %c496_i32 = arith.constant 496 : i32
    %32 = tpu.dynamic_rotate %0 by %c496_i32 dim 1 : vector<8x512xf32>, i32 -> vector<8x512xf32>
    %c7 = arith.constant 7 : index
    %c0_16 = arith.constant 0 : index
    %33 = vector.load %arg7[%c7, %c0_16] : memref<9x512xf32, #tpu.memory_space<vmem>>, vector<1x512xf32>
    %34 = vector.broadcast %33 : vector<1x512xf32> to vector<8x512xf32>
    %35 = arith.mulf %32, %34 : vector<8x512xf32>
    %c56 = arith.constant 56 : index
    %c0_17 = arith.constant 0 : index
    %36 = vector.load %arg10[%c56, %c0_17] : memref<72x512xf32, #tpu.memory_space<vmem>>, vector<8x512xf32>
    tpu.vector_store %arg10[%c56, %c0_17], %35 {strides = array<i32>} : memref<72x512xf32, #tpu.memory_space<vmem>>, vector<8x512xf32>,
    %c495_i32 = arith.constant 495 : i32
    %37 = tpu.dynamic_rotate %0 by %c495_i32 dim 1 : vector<8x512xf32>, i32 -> vector<8x512xf32>
    %c8_18 = arith.constant 8 : index
    %c0_19 = arith.constant 0 : index
    %38 = vector.load %arg7[%c8_18, %c0_19] : memref<9x512xf32, #tpu.memory_space<vmem>>, vector<1x512xf32>
    %39 = vector.broadcast %38 : vector<1x512xf32> to vector<8x512xf32>
    %40 = arith.mulf %37, %39 : vector<8x512xf32>
    %c64 = arith.constant 64 : index
    %c0_20 = arith.constant 0 : index
    %41 = vector.load %arg10[%c64, %c0_20] : memref<72x512xf32, #tpu.memory_space<vmem>>, vector<8x512xf32>
    tpu.vector_store %arg10[%c64, %c0_20], %40 {strides = array<i32>} : memref<72x512xf32, #tpu.memory_space<vmem>>, vector<8x512xf32>,
    %c0_21 = arith.constant 0 : index
    %c0_22 = arith.constant 0 : index
    %42 = vector.load %arg1[%c0_21, %c0_22] : memref<8x72xf32, #tpu.memory_space<vmem>>, vector<8x72xf32>
    %c0_23 = arith.constant 0 : index
    %c0_24 = arith.constant 0 : index
    %43 = vector.load %arg10[%c0_23, %c0_24] : memref<72x512xf32, #tpu.memory_space<vmem>>, vector<72x512xf32>
    %cst = arith.constant dense<0.000000e+00> : vector<8x512xf32>
    %44 = tpu.matmul %42, %43, %cst {dimension_numbers = #tpu.dot_dimension_numbers<[1], [0], [0], [1], [0, 0, 1, 1], [], []>} : vector<8x72xf32>, vector<72x512xf32>, vector<8x512xf32> -> vector<8x512xf32>
    %c0_25 = arith.constant 0 : index
    %c0_26 = arith.constant 0 : index
    %45 = vector.load %arg3[%c0_25, %c0_26] : memref<8x1xf32, #tpu.memory_space<vmem>>, vector<8x1xf32>
    %c0_27 = arith.constant 0 : index
    %c0_28 = arith.constant 0 : index
    %46 = vector.load %arg4[%c0_27, %c0_28] : memref<8x1xf32, #tpu.memory_space<vmem>>, vector<8x1xf32>
    %cst_29 = arith.constant dense<0.000000e+00> : vector<8xf32>
    %47 = vector.multi_reduction <add>, %44, %cst_29 [1] : vector<8x512xf32> to vector<8xf32>
    %48 = vector.shape_cast %47 : vector<8xf32> to vector<8x1xf32>
    %49 = arith.mulf %44, %44 : vector<8x512xf32>
    %cst_30 = arith.constant dense<0.000000e+00> : vector<8xf32>
    %50 = vector.multi_reduction <add>, %49, %cst_30 [1] : vector<8x512xf32> to vector<8xf32>
    %51 = vector.shape_cast %50 : vector<8xf32> to vector<8x1xf32>
    %cst_31 = arith.constant 0.001953125 : f32
    %52 = vector.broadcast %cst_31 : f32 to vector<8x1xf32>
    %53 = arith.mulf %48, %52 : vector<8x1xf32>
    %cst_32 = arith.constant 0.001953125 : f32
    %54 = vector.broadcast %cst_32 : f32 to vector<8x1xf32>
    %55 = arith.mulf %51, %54 : vector<8x1xf32>
    %56 = arith.mulf %53, %53 : vector<8x1xf32>
    %57 = arith.subf %55, %56 : vector<8x1xf32>
    %cst_33 = arith.constant 9.99999974E-6 : f32
    %58 = vector.broadcast %cst_33 : f32 to vector<8x1xf32>
    %59 = arith.addf %57, %58 : vector<8x1xf32>
    %60 = math.rsqrt %59 : vector<8x1xf32>
    %61 = arith.mulf %45, %60 : vector<8x1xf32>
    %62 = vector.broadcast %53 : vector<8x1xf32> to vector<8x512xf32>
    %63 = arith.subf %44, %62 : vector<8x512xf32>
    %64 = vector.broadcast %61 : vector<8x1xf32> to vector<8x512xf32>
    %65 = arith.mulf %63, %64 : vector<8x512xf32>
    %66 = vector.broadcast %46 : vector<8x1xf32> to vector<8x512xf32>
    %67 = arith.addf %65, %66 : vector<8x512xf32>
    %cst_34 = arith.constant 0.000000e+00 : f32
    %68 = vector.broadcast %cst_34 : f32 to vector<8x512xf32>
    %69 = arith.cmpf oge, %67, %68 : vector<8x512xf32>
    %cst_35 = arith.constant 2.000000e-01 : f32
    %70 = vector.broadcast %cst_35 : f32 to vector<8x512xf32>
    %71 = arith.mulf %70, %67 : vector<8x512xf32>
    %72 = arith.select %69, %67, %71 : vector<8x512xi1>, vector<8x512xf32>
    %c17_i32_36 = arith.constant 17 : i32
    %73 = tpu.dynamic_rotate %72 by %c17_i32_36 dim 1 : vector<8x512xf32>, i32 -> vector<8x512xf32>
    %c0_37 = arith.constant 0 : index
    %c0_38 = arith.constant 0 : index
    %74 = vector.load %arg7[%c0_37, %c0_38] : memref<9x512xf32, #tpu.memory_space<vmem>>, vector<1x512xf32>
    %75 = vector.broadcast %74 : vector<1x512xf32> to vector<8x512xf32>
    %76 = arith.mulf %73, %75 : vector<8x512xf32>
    %c0_39 = arith.constant 0 : index
    %c0_40 = arith.constant 0 : index
    %77 = vector.load %arg11[%c0_39, %c0_40] : memref<72x512xf32, #tpu.memory_space<vmem>>, vector<8x512xf32>
    tpu.vector_store %arg11[%c0_39, %c0_40], %76 {strides = array<i32>} : memref<72x512xf32, #tpu.memory_space<vmem>>, vector<8x512xf32>,
    %c16_i32_41 = arith.constant 16 : i32
    %78 = tpu.dynamic_rotate %72 by %c16_i32_41 dim 1 : vector<8x512xf32>, i32 -> vector<8x512xf32>
    %c1_42 = arith.constant 1 : index
    %c0_43 = arith.constant 0 : index
    %79 = vector.load %arg7[%c1_42, %c0_43] : memref<9x512xf32, #tpu.memory_space<vmem>>, vector<1x512xf32>
    %80 = vector.broadcast %79 : vector<1x512xf32> to vector<8x512xf32>
    %81 = arith.mulf %78, %80 : vector<8x512xf32>
    %c8_44 = arith.constant 8 : index
    %c0_45 = arith.constant 0 : index
    %82 = vector.load %arg11[%c8_44, %c0_45] : memref<72x512xf32, #tpu.memory_space<vmem>>, vector<8x512xf32>
    tpu.vector_store %arg11[%c8_44, %c0_45], %81 {strides = array<i32>} : memref<72x512xf32, #tpu.memory_space<vmem>>, vector<8x512xf32>,
    %c15_i32_46 = arith.constant 15 : i32
    %83 = tpu.dynamic_rotate %72 by %c15_i32_46 dim 1 : vector<8x512xf32>, i32 -> vector<8x512xf32>
    %c2_47 = arith.constant 2 : index
    %c0_48 = arith.constant 0 : index
    %84 = vector.load %arg7[%c2_47, %c0_48] : memref<9x512xf32, #tpu.memory_space<vmem>>, vector<1x512xf32>
    %85 = vector.broadcast %84 : vector<1x512xf32> to vector<8x512xf32>
    %86 = arith.mulf %83, %85 : vector<8x512xf32>
    %c16_49 = arith.constant 16 : index
    %c0_50 = arith.constant 0 : index
    %87 = vector.load %arg11[%c16_49, %c0_50] : memref<72x512xf32, #tpu.memory_space<vmem>>, vector<8x512xf32>
    tpu.vector_store %arg11[%c16_49, %c0_50], %86 {strides = array<i32>} : memref<72x512xf32, #tpu.memory_space<vmem>>, vector<8x512xf32>,
    %c1_i32_51 = arith.constant 1 : i32
    %88 = tpu.dynamic_rotate %72 by %c1_i32_51 dim 1 : vector<8x512xf32>, i32 -> vector<8x512xf32>
    %c3_52 = arith.constant 3 : index
    %c0_53 = arith.constant 0 : index
    %89 = vector.load %arg7[%c3_52, %c0_53] : memref<9x512xf32, #tpu.memory_space<vmem>>, vector<1x512xf32>
    %90 = vector.broadcast %89 : vector<1x512xf32> to vector<8x512xf32>
    %91 = arith.mulf %88, %90 : vector<8x512xf32>
    %c24_54 = arith.constant 24 : index
    %c0_55 = arith.constant 0 : index
    %92 = vector.load %arg11[%c24_54, %c0_55] : memref<72x512xf32, #tpu.memory_space<vmem>>, vector<8x512xf32>
    tpu.vector_store %arg11[%c24_54, %c0_55], %91 {strides = array<i32>} : memref<72x512xf32, #tpu.memory_space<vmem>>, vector<8x512xf32>,
    %c32_56 = arith.constant 32 : index
    %c0_57 = arith.constant 0 : index
    %93 = vector.load %arg11[%c32_56, %c0_57] : memref<72x512xf32, #tpu.memory_space<vmem>>, vector<8x512xf32>
    tpu.vector_store %arg11[%c32_56, %c0_57], %72 {strides = array<i32>} : memref<72x512xf32, #tpu.memory_space<vmem>>, vector<8x512xf32>,
    %c511_i32_58 = arith.constant 511 : i32
    %94 = tpu.dynamic_rotate %72 by %c511_i32_58 dim 1 : vector<8x512xf32>, i32 -> vector<8x512xf32>
    %c5_59 = arith.constant 5 : index
    %c0_60 = arith.constant 0 : index
    %95 = vector.load %arg7[%c5_59, %c0_60] : memref<9x512xf32, #tpu.memory_space<vmem>>, vector<1x512xf32>
    %96 = vector.broadcast %95 : vector<1x512xf32> to vector<8x512xf32>
    %97 = arith.mulf %94, %96 : vector<8x512xf32>
    %c40_61 = arith.constant 40 : index
    %c0_62 = arith.constant 0 : index
    %98 = vector.load %arg11[%c40_61, %c0_62] : memref<72x512xf32, #tpu.memory_space<vmem>>, vector<8x512xf32>
    tpu.vector_store %arg11[%c40_61, %c0_62], %97 {strides = array<i32>} : memref<72x512xf32, #tpu.memory_space<vmem>>, vector<8x512xf32>,
    %c497_i32_63 = arith.constant 497 : i32
    %99 = tpu.dynamic_rotate %72 by %c497_i32_63 dim 1 : vector<8x512xf32>, i32 -> vector<8x512xf32>
    %c6_64 = arith.constant 6 : index
    %c0_65 = arith.constant 0 : index
    %100 = vector.load %arg7[%c6_64, %c0_65] : memref<9x512xf32, #tpu.memory_space<vmem>>, vector<1x512xf32>
    %101 = vector.broadcast %100 : vector<1x512xf32> to vector<8x512xf32>
    %102 = arith.mulf %99, %101 : vector<8x512xf32>
    %c48_66 = arith.constant 48 : index
    %c0_67 = arith.constant 0 : index
    %103 = vector.load %arg11[%c48_66, %c0_67] : memref<72x512xf32, #tpu.memory_space<vmem>>, vector<8x512xf32>
    tpu.vector_store %arg11[%c48_66, %c0_67], %102 {strides = array<i32>} : memref<72x512xf32, #tpu.memory_space<vmem>>, vector<8x512xf32>,
    %c496_i32_68 = arith.constant 496 : i32
    %104 = tpu.dynamic_rotate %72 by %c496_i32_68 dim 1 : vector<8x512xf32>, i32 -> vector<8x512xf32>
    %c7_69 = arith.constant 7 : index
    %c0_70 = arith.constant 0 : index
    %105 = vector.load %arg7[%c7_69, %c0_70] : memref<9x512xf32, #tpu.memory_space<vmem>>, vector<1x512xf32>
    %106 = vector.broadcast %105 : vector<1x512xf32> to vector<8x512xf32>
    %107 = arith.mulf %104, %106 : vector<8x512xf32>
    %c56_71 = arith.constant 56 : index
    %c0_72 = arith.constant 0 : index
    %108 = vector.load %arg11[%c56_71, %c0_72] : memref<72x512xf32, #tpu.memory_space<vmem>>, vector<8x512xf32>
    tpu.vector_store %arg11[%c56_71, %c0_72], %107 {strides = array<i32>} : memref<72x512xf32, #tpu.memory_space<vmem>>, vector<8x512xf32>,
    %c495_i32_73 = arith.constant 495 : i32
    %109 = tpu.dynamic_rotate %72 by %c495_i32_73 dim 1 : vector<8x512xf32>, i32 -> vector<8x512xf32>
    %c8_74 = arith.constant 8 : index
    %c0_75 = arith.constant 0 : index
    %110 = vector.load %arg7[%c8_74, %c0_75] : memref<9x512xf32, #tpu.memory_space<vmem>>, vector<1x512xf32>
    %111 = vector.broadcast %110 : vector<1x512xf32> to vector<8x512xf32>
    %112 = arith.mulf %109, %111 : vector<8x512xf32>
    %c64_76 = arith.constant 64 : index
    %c0_77 = arith.constant 0 : index
    %113 = vector.load %arg11[%c64_76, %c0_77] : memref<72x512xf32, #tpu.memory_space<vmem>>, vector<8x512xf32>
    tpu.vector_store %arg11[%c64_76, %c0_77], %112 {strides = array<i32>} : memref<72x512xf32, #tpu.memory_space<vmem>>, vector<8x512xf32>,
    %c0_78 = arith.constant 0 : index
    %c0_79 = arith.constant 0 : index
    %114 = vector.load %arg2[%c0_78, %c0_79] : memref<8x72xf32, #tpu.memory_space<vmem>>, vector<8x72xf32>
    %c0_80 = arith.constant 0 : index
    %c0_81 = arith.constant 0 : index
    %115 = vector.load %arg11[%c0_80, %c0_81] : memref<72x512xf32, #tpu.memory_space<vmem>>, vector<72x512xf32>
    %cst_82 = arith.constant dense<0.000000e+00> : vector<8x512xf32>
    %116 = tpu.matmul %114, %115, %cst_82 {dimension_numbers = #tpu.dot_dimension_numbers<[1], [0], [0], [1], [0, 0, 1, 1], [], []>} : vector<8x72xf32>, vector<72x512xf32>, vector<8x512xf32> -> vector<8x512xf32>
    %c0_83 = arith.constant 0 : index
    %c0_84 = arith.constant 0 : index
    %117 = vector.load %arg5[%c0_83, %c0_84] : memref<8x1xf32, #tpu.memory_space<vmem>>, vector<8x1xf32>
    %c0_85 = arith.constant 0 : index
    %c0_86 = arith.constant 0 : index
    %118 = vector.load %arg6[%c0_85, %c0_86] : memref<8x1xf32, #tpu.memory_space<vmem>>, vector<8x1xf32>
    %cst_87 = arith.constant dense<0.000000e+00> : vector<8xf32>
    %119 = vector.multi_reduction <add>, %116, %cst_87 [1] : vector<8x512xf32> to vector<8xf32>
    %120 = vector.shape_cast %119 : vector<8xf32> to vector<8x1xf32>
    %121 = arith.mulf %116, %116 : vector<8x512xf32>
    %cst_88 = arith.constant dense<0.000000e+00> : vector<8xf32>
    %122 = vector.multi_reduction <add>, %121, %cst_88 [1] : vector<8x512xf32> to vector<8xf32>
    %123 = vector.shape_cast %122 : vector<8xf32> to vector<8x1xf32>
    %cst_89 = arith.constant 0.001953125 : f32
    %124 = vector.broadcast %cst_89 : f32 to vector<8x1xf32>
    %125 = arith.mulf %120, %124 : vector<8x1xf32>
    %cst_90 = arith.constant 0.001953125 : f32
    %126 = vector.broadcast %cst_90 : f32 to vector<8x1xf32>
    %127 = arith.mulf %123, %126 : vector<8x1xf32>
    %128 = arith.mulf %125, %125 : vector<8x1xf32>
    %129 = arith.subf %127, %128 : vector<8x1xf32>
    %cst_91 = arith.constant 9.99999974E-6 : f32
    %130 = vector.broadcast %cst_91 : f32 to vector<8x1xf32>
    %131 = arith.addf %129, %130 : vector<8x1xf32>
    %132 = math.rsqrt %131 : vector<8x1xf32>
    %133 = arith.mulf %117, %132 : vector<8x1xf32>
    %134 = vector.broadcast %125 : vector<8x1xf32> to vector<8x512xf32>
    %135 = arith.subf %116, %134 : vector<8x512xf32>
    %136 = vector.broadcast %133 : vector<8x1xf32> to vector<8x512xf32>
    %137 = arith.mulf %135, %136 : vector<8x512xf32>
    %138 = vector.broadcast %118 : vector<8x1xf32> to vector<8x512xf32>
    %139 = arith.addf %137, %138 : vector<8x512xf32>
    %cst_92 = arith.constant 0.000000e+00 : f32
    %140 = vector.broadcast %cst_92 : f32 to vector<8x512xf32>
    %141 = arith.cmpf oge, %139, %140 : vector<8x512xf32>
    %cst_93 = arith.constant 2.000000e-01 : f32
    %142 = vector.broadcast %cst_93 : f32 to vector<8x512xf32>
    %143 = arith.mulf %142, %139 : vector<8x512xf32>
    %144 = arith.select %141, %139, %143 : vector<8x512xi1>, vector<8x512xf32>
    %c0_94 = arith.constant 0 : index
    %c0_95 = arith.constant 0 : index
    %145 = vector.load %arg8[%c0_94, %c0_95] : memref<512x128xf32, #tpu.memory_space<vmem>>, vector<512x128xf32>
    %cst_96 = arith.constant dense<0.000000e+00> : vector<8x128xf32>
    %146 = tpu.matmul %144, %145, %cst_96 {dimension_numbers = #tpu.dot_dimension_numbers<[1], [0], [0], [1], [0, 0, 1, 1], [], []>} : vector<8x512xf32>, vector<512x128xf32>, vector<8x128xf32> -> vector<8x128xf32>
    %c0_97 = arith.constant 0 : index
    %c0_98 = arith.constant 0 : index
    %147 = vector.load %arg9[%c0_97, %c0_98] : memref<8x128xf32, #tpu.memory_space<vmem>>, vector<8x128xf32>
    tpu.vector_store %arg9[%c0_97, %c0_98], %146 {strides = array<i32>} : memref<8x128xf32, #tpu.memory_space<vmem>>, vector<8x128xf32>,
    return
  }
}

</mosaic_0001>

<llo_original>
// kernel: agent_conv_block_bn.1
$region0: #{agent_conv_block_bn.1}
  #allocation0 [shape = 'u32[]', space=smem, size = 0x4, offset = 0x4, fixed_abs, tag = 'smem constant byte address 0x4 - core index']
  #allocation1 [shape = 'u32[144,128]{1,0:T(1,128)}', space=vmem, size = 0x12000, scoped, tag = 'internal scratch']
  #allocation2 [shape = 'f32[72,512]{1,0:T(8,128)}', space=vmem, size = 0x24000, scoped, tag = 'scratch operand']
  #allocation3 [shape = 'f32[72,512]{1,0:T(8,128)}', space=vmem, size = 0x24000, scoped, tag = 'scratch operand']
  %s0 = inlined_call_operand.vmem [shape: f32[8,512], index: 0, kind: input, shape index: {}]
  %s1 = inlined_call_operand.vmem [shape: f32[8,72], index: 1, kind: input, shape index: {}]
  %s2 = inlined_call_operand.vmem [shape: f32[8,72], index: 2, kind: input, shape index: {}]
  %s3 = inlined_call_operand.vmem [shape: f32[8,1], index: 3, kind: input, shape index: {}]
  %s4 = inlined_call_operand.vmem [shape: f32[8,1], index: 4, kind: input, shape index: {}]
  %s5 = inlined_call_operand.vmem [shape: f32[8,1], index: 5, kind: input, shape index: {}]
  %s6 = inlined_call_operand.vmem [shape: f32[8,1], index: 6, kind: input, shape index: {}]
  %s7 = inlined_call_operand.vmem [shape: f32[9,512], index: 7, kind: input, shape index: {}]
  %s8 = inlined_call_operand.vmem [shape: f32[512,128], index: 8, kind: input, shape index: {}]
  %s9 = inlined_call_operand.vmem [shape: f32[8,128], index: 9, kind: output, shape index: {}]
  %s10 = sld [smem:[#allocation0]]
  $region46: #{agent_conv_block_bn.1} parent=0
    _
  %s12 = ssub.s32 1, %s10
  %s13 = scalar_select 0, %s12, %s10
  // Predicated region
  $region2: #{agent_conv_block_bn.1} parent=0 // pred_check
    _
  $region3: #{agent_conv_block_bn.1} parent=0 // pred_check_branch
    %15 = sbr.rel (0) target = $region5
  $region4: #{agent_conv_block_bn.1} parent=0 // pred_region
    _
  $region5: #{agent_conv_block_bn.1} parent=0 // pred_fallthru
    _
  // Predicated region
  $region6: #{agent_conv_block_bn.1} parent=0 // pred_check
    _
  $region7: #{agent_conv_block_bn.1} parent=0 // pred_check_branch
    %17 = sbr.rel (0) target = $region9
  $region8: #{agent_conv_block_bn.1} parent=0 // pred_region
    _
  $region9: #{agent_conv_block_bn.1} parent=0 // pred_fallthru
    _
  // Predicated region
  $region10: #{agent_conv_block_bn.1} parent=0 // pred_check
    _
  $region11: #{agent_conv_block_bn.1} parent=0 // pred_check_branch
    %19 = sbr.rel (0) target = $region13
  $region12: #{agent_conv_block_bn.1} parent=0 // pred_region
    _
  $region13: #{agent_conv_block_bn.1} parent=0 // pred_fallthru
    _
  // Predicated region
  $region14: #{agent_conv_block_bn.1} parent=0 // pred_check
    _
  $region15: #{agent_conv_block_bn.1} parent=0 // pred_check_branch
    %21 = sbr.rel (0) target = $region17
  $region16: #{agent_conv_block_bn.1} parent=0 // pred_region
    _
  $region17: #{agent_conv_block_bn.1} parent=0 // pred_fallthru
    _
  // Predicated region
  $region18: #{agent_conv_block_bn.1} parent=0 // pred_check
    _
  $region19: #{agent_conv_block_bn.1} parent=0 // pred_check_branch
    %23 = sbr.rel (0) target = $region21
  $region20: #{agent_conv_block_bn.1} parent=0 // pred_region
    _
  $region21: #{agent_conv_block_bn.1} parent=0 // pred_fallthru
    _
  // Predicated region
  $region22: #{agent_conv_block_bn.1} parent=0 // pred_check
    _
  $region23: #{agent_conv_block_bn.1} parent=0 // pred_check_branch
    %25 = sbr.rel (0) target = $region25
  $region24: #{agent_conv_block_bn.1} parent=0 // pred_region
    _
  $region25: #{agent_conv_block_bn.1} parent=0 // pred_fallthru
    _
  // Predicated region
  $region26: #{agent_conv_block_bn.1} parent=0 // pred_check
    _
  $region27: #{agent_conv_block_bn.1} parent=0 // pred_check_branch
    %27 = sbr.rel (0) target = $region29
  $region28: #{agent_conv_block_bn.1} parent=0 // pred_region
    _
  $region29: #{agent_conv_block_bn.1} parent=0 // pred_fallthru
    _
  // Predicated region
  $region30: #{agent_conv_block_bn.1} parent=0 // pred_check
    _
  $region31: #{agent_conv_block_bn.1} parent=0 // pred_check_branch
    %29 = sbr.rel (0) target = $region33
  $region32: #{agent_conv_block_bn.1} parent=0 // pred_region
    _
  $region33: #{agent_conv_block_bn.1} parent=0 // pred_fallthru
    _
  // Predicated region
  $region34: #{agent_conv_block_bn.1} parent=0 // pred_check
    _
  $region35: #{agent_conv_block_bn.1} parent=0 // pred_check_branch
    %31 = sbr.rel (0) target = $region37
  $region36: #{agent_conv_block_bn.1} parent=0 // pred_region
    _
  $region37: #{agent_conv_block_bn.1} parent=0 // pred_fallthru
    _
  %v32 = vld [vmem:[%s0] sm:$0xff]
  %v33 = vld [vmem:[%s0 + $0x8] sm:$0xff]
  %v34 = vld [vmem:[%s0 + $0x10] sm:$0xff]
  %v35 = vld [vmem:[%s0 + $0x18] sm:$0xff]
  %36 = vrot.lane.b32.xlu0 %v32, 17
  %v37 = vpop.permute.xlu0 %36
  %38 = vrot.lane.b32.xlu0 %v33, 17
  %v39 = vpop.permute.xlu0 %38
  %40 = vrot.lane.b32.xlu0 %v34, 17
  %v41 = vpop.permute.xlu0 %40
  %42 = vrot.lane.b32.xlu0 %v35, 17
  %v43 = vpop.permute.xlu0 %42
  %v44 = vlaneseq
  %v45 = vand.u32 %v44, 127
  %vm46 = vcmp.lt.s32.totalorder %v45, 17
  %v47 = vsel %vm46, %v41, %v43
  %v48 = vsel %vm46, %v39, %v41
  %v49 = vsel %vm46, %v37, %v39
  %v50 = vsel %vm46, %v43, %v37
  %v51 = vld [vmem:[%s7] ss:$8 sm:$0xf]
  %v53 = vlaneseq
  %v54 = vshrl.u32 %v53, 7
  %v55 = vsub.s32 0, %v54
  %v56 = vrot.slane %v51, %v55
  %v57 = vlaneseq
  %v58 = vshrl.u32 %v57, 7
  %v59 = vsub.s32 1, %v58
  %v60 = vrot.slane %v51, %v59
  %v61 = vlaneseq
  %v62 = vshrl.u32 %v61, 7
  %v63 = vsub.s32 2, %v62
  %v64 = vrot.slane %v51, %v63
  %v65 = vlaneseq
  %v66 = vshrl.u32 %v65, 7
  %v67 = vsub.s32 3, %v66
  %v68 = vrot.slane %v51, %v67
  %v73 = vmul.f32 %v50, %v56
  %v74 = vmul.f32 %v49, %v60
  %v75 = vmul.f32 %v48, %v64
  %v76 = vmul.f32 %v47, %v68
  %77 = vst [vmem:[#allocation2] sm:$0xff] %v73
  %78 = vst [vmem:[#allocation2 + $0x8] sm:$0xff] %v74
  %79 = vst [vmem:[#allocation2 + $0x10] sm:$0xff] %v75
  %80 = vst [vmem:[#allocation2 + $0x18] sm:$0xff] %v76
  %81 = vrot.lane.b32.xlu0 %v32, 16
  %v82 = vpop.permute.xlu0 %81
  %83 = vrot.lane.b32.xlu0 %v33, 16
  %v84 = vpop.permute.xlu0 %83
  %85 = vrot.lane.b32.xlu0 %v34, 16
  %v86 = vpop.permute.xlu0 %85
  %87 = vrot.lane.b32.xlu0 %v35, 16
  %v88 = vpop.permute.xlu0 %87
  %vm89 = vcmp.lt.s32.totalorder %v45, 16
  %v90 = vsel %vm89, %v86, %v88
  %v91 = vsel %vm89, %v84, %v86
  %v92 = vsel %vm89, %v82, %v84
  %v93 = vsel %vm89, %v88, %v82
  %s94 = scalar_lea.vmem %s7, 1
  %v95 = vld [vmem:[%s94] ss:$8 sm:$0xf]
  %v97 = vlaneseq
  %v98 = vshrl.u32 %v97, 7
  %v99 = vsub.s32 0, %v98
  %v100 = vrot.slane %v95, %v99
  %v101 = vlaneseq
  %v102 = vshrl.u32 %v101, 7
  %v103 = vsub.s32 1, %v102
  %v104 = vrot.slane %v95, %v103
  %v105 = vlaneseq
  %v106 = vshrl.u32 %v105, 7
  %v107 = vsub.s32 2, %v106
  %v108 = vrot.slane %v95, %v107
  %v109 = vlaneseq
  %v110 = vshrl.u32 %v109, 7
  %v111 = vsub.s32 3, %v110
  %v112 = vrot.slane %v95, %v111
  %v117 = vmul.f32 %v93, %v100
  %v118 = vmul.f32 %v92, %v104
  %v119 = vmul.f32 %v91, %v108
  %v120 = vmul.f32 %v90, %v112
  %121 = vst [vmem:[#allocation2 + $0x20] sm:$0xff] %v117
  %122 = vst [vmem:[#allocation2 + $0x28] sm:$0xff] %v118
  %123 = vst [vmem:[#allocation2 + $0x30] sm:$0xff] %v119
  %124 = vst [vmem:[#allocation2 + $0x38] sm:$0xff] %v120
  %125 = vrot.lane.b32.xlu0 %v32, 15
  %v126 = vpop.permute.xlu0 %125
  %127 = vrot.lane.b32.xlu0 %v33, 15
  %v128 = vpop.permute.xlu0 %127
  %129 = vrot.lane.b32.xlu0 %v34, 15
  %v130 = vpop.permute.xlu0 %129
  %131 = vrot.lane.b32.xlu0 %v35, 15
  %v132 = vpop.permute.xlu0 %131
  %vm133 = vcmp.lt.s32.totalorder %v45, 15
  %v134 = vsel %vm133, %v130, %v132
  %v135 = vsel %vm133, %v128, %v130
  %v136 = vsel %vm133, %v126, %v128
  %v137 = vsel %vm133, %v132, %v126
  %s138 = scalar_lea.vmem %s7, 2
  %v139 = vld [vmem:[%s138] ss:$8 sm:$0xf]
  %v141 = vlaneseq
  %v142 = vshrl.u32 %v141, 7
  %v143 = vsub.s32 0, %v142
  %v144 = vrot.slane %v139, %v143
  %v145 = vlaneseq
  %v146 = vshrl.u32 %v145, 7
  %v147 = vsub.s32 1, %v146
  %v148 = vrot.slane %v139, %v147
  %v149 = vlaneseq
  %v150 = vshrl.u32 %v149, 7
  %v151 = vsub.s32 2, %v150
  %v152 = vrot.slane %v139, %v151
  %v153 = vlaneseq
  %v154 = vshrl.u32 %v153, 7
  %v155 = vsub.s32 3, %v154
  %v156 = vrot.slane %v139, %v155
  %v161 = vmul.f32 %v137, %v144
  %v162 = vmul.f32 %v136, %v148
  %v163 = vmul.f32 %v135, %v152
  %v164 = vmul.f32 %v134, %v156
  %165 = vst [vmem:[#allocation2 + $0x40] sm:$0xff] %v161
  %166 = vst [vmem:[#allocation2 + $0x48] sm:$0xff] %v162
  %167 = vst [vmem:[#allocation2 + $0x50] sm:$0xff] %v163
  %168 = vst [vmem:[#allocation2 + $0x58] sm:$0xff] %v164
  %169 = vrot.lane.b32.xlu0 %v32, 1
  %v170 = vpop.permute.xlu0 %169
  %171 = vrot.lane.b32.xlu0 %v33, 1
  %v172 = vpop.permute.xlu0 %171
  %173 = vrot.lane.b32.xlu0 %v34, 1
  %v174 = vpop.permute.xlu0 %173
  %175 = vrot.lane.b32.xlu0 %v35, 1
  %v176 = vpop.permute.xlu0 %175
  %vm177 = vcmp.lt.s32.totalorder %v45, 1
  %v178 = vsel %vm177, %v174, %v176
  %v179 = vsel %vm177, %v172, %v174
  %v180 = vsel %vm177, %v170, %v172
  %v181 = vsel %vm177, %v176, %v170
  %s182 = scalar_lea.vmem %s7, 3
  %v183 = vld [vmem:[%s182] ss:$8 sm:$0xf]
  %v185 = vlaneseq
  %v186 = vshrl.u32 %v185, 7
  %v187 = vsub.s32 0, %v186
  %v188 = vrot.slane %v183, %v187
  %v189 = vlaneseq
  %v190 = vshrl.u32 %v189, 7
  %v191 = vsub.s32 1, %v190
  %v192 = vrot.slane %v183, %v191
  %v193 = vlaneseq
  %v194 = vshrl.u32 %v193, 7
  %v195 = vsub.s32 2, %v194
  %v196 = vrot.slane %v183, %v195
  %v197 = vlaneseq
  %v198 = vshrl.u32 %v197, 7
  %v199 = vsub.s32 3, %v198
  %v200 = vrot.slane %v183, %v199
  %v205 = vmul.f32 %v181, %v188
  %v206 = vmul.f32 %v180, %v192
  %v207 = vmul.f32 %v179, %v196
  %v208 = vmul.f32 %v178, %v200
  %209 = vst [vmem:[#allocation2 + $0x60] sm:$0xff] %v205
  %210 = vst [vmem:[#allocation2 + $0x68] sm:$0xff] %v206
  %211 = vst [vmem:[#allocation2 + $0x70] sm:$0xff] %v207
  %212 = vst [vmem:[#allocation2 + $0x78] sm:$0xff] %v208
  %213 = vst [vmem:[#allocation2 + $0x80] sm:$0xff] %v32
  %214 = vst [vmem:[#allocation2 + $0x88] sm:$0xff] %v33
  %215 = vst [vmem:[#allocation2 + $0x90] sm:$0xff] %v34
  %216 = vst [vmem:[#allocation2 + $0x98] sm:$0xff] %v35
  %217 = vrot.lane.b32.xlu0 %v32, 127
  %v218 = vpop.permute.xlu0 %217
  %219 = vrot.lane.b32.xlu0 %v33, 127
  %v220 = vpop.permute.xlu0 %219
  %221 = vrot.lane.b32.xlu0 %v34, 127
  %v222 = vpop.permute.xlu0 %221
  %223 = vrot.lane.b32.xlu0 %v35, 127
  %v224 = vpop.permute.xlu0 %223
  %vm225 = vcmp.lt.s32.totalorder %v45, 127
  %v226 = vsel %vm225, %v222, %v224
  %v227 = vsel %vm225, %v220, %v222
  %v228 = vsel %vm225, %v218, %v220
  %v229 = vsel %vm225, %v224, %v218
  %s230 = scalar_lea.vmem %s7, 5
  %v231 = vld [vmem:[%s230] ss:$8 sm:$0xf]
  %v233 = vlaneseq
  %v234 = vshrl.u32 %v233, 7
  %v235 = vsub.s32 0, %v234
  %v236 = vrot.slane %v231, %v235
  %v237 = vlaneseq
  %v238 = vshrl.u32 %v237, 7
  %v239 = vsub.s32 1, %v238
  %v240 = vrot.slane %v231, %v239
  %v241 = vlaneseq
  %v242 = vshrl.u32 %v241, 7
  %v243 = vsub.s32 2, %v242
  %v244 = vrot.slane %v231, %v243
  %v245 = vlaneseq
  %v246 = vshrl.u32 %v245, 7
  %v247 = vsub.s32 3, %v246
  %v248 = vrot.slane %v231, %v247
  %v253 = vmul.f32 %v228, %v236
  %v254 = vmul.f32 %v227, %v240
  %v255 = vmul.f32 %v226, %v244
  %v256 = vmul.f32 %v229, %v248
  %257 = vst [vmem:[#allocation2 + $0xa0] sm:$0xff] %v253
  %258 = vst [vmem:[#allocation2 + $0xa8] sm:$0xff] %v254
  %259 = vst [vmem:[#allocation2 + $0xb0] sm:$0xff] %v255
  %260 = vst [vmem:[#allocation2 + $0xb8] sm:$0xff] %v256
  %261 = vrot.lane.b32.xlu0 %v32, 113
  %v262 = vpop.permute.xlu0 %261
  %263 = vrot.lane.b32.xlu0 %v33, 113
  %v264 = vpop.permute.xlu0 %263
  %265 = vrot.lane.b32.xlu0 %v34, 113
  %v266 = vpop.permute.xlu0 %265
  %267 = vrot.lane.b32.xlu0 %v35, 113
  %v268 = vpop.permute.xlu0 %267
  %vm269 = vcmp.lt.s32.totalorder %v45, 113
  %v270 = vsel %vm269, %v266, %v268
  %v271 = vsel %vm269, %v264, %v266
  %v272 = vsel %vm269, %v262, %v264
  %v273 = vsel %vm269, %v268, %v262
  %s274 = scalar_lea.vmem %s7, 6
  %v275 = vld [vmem:[%s274] ss:$8 sm:$0xf]
  %v277 = vlaneseq
  %v278 = vshrl.u32 %v277, 7
  %v279 = vsub.s32 0, %v278
  %v280 = vrot.slane %v275, %v279
  %v281 = vlaneseq
  %v282 = vshrl.u32 %v281, 7
  %v283 = vsub.s32 1, %v282
  %v284 = vrot.slane %v275, %v283
  %v285 = vlaneseq
  %v286 = vshrl.u32 %v285, 7
  %v287 = vsub.s32 2, %v286
  %v288 = vrot.slane %v275, %v287
  %v289 = vlaneseq
  %v290 = vshrl.u32 %v289, 7
  %v291 = vsub.s32 3, %v290
  %v292 = vrot.slane %v275, %v291
  %v297 = vmul.f32 %v272, %v280
  %v298 = vmul.f32 %v271, %v284
  %v299 = vmul.f32 %v270, %v288
  %v300 = vmul.f32 %v273, %v292
  %301 = vst [vmem:[#allocation2 + $0xc0] sm:$0xff] %v297
  %302 = vst [vmem:[#allocation2 + $0xc8] sm:$0xff] %v298
  %303 = vst [vmem:[#allocation2 + $0xd0] sm:$0xff] %v299
  %304 = vst [vmem:[#allocation2 + $0xd8] sm:$0xff] %v300
  %305 = vrot.lane.b32.xlu0 %v32, 112
  %v306 = vpop.permute.xlu0 %305
  %307 = vrot.lane.b32.xlu0 %v33, 112
  %v308 = vpop.permute.xlu0 %307
  %309 = vrot.lane.b32.xlu0 %v34, 112
  %v310 = vpop.permute.xlu0 %309
  %311 = vrot.lane.b32.xlu0 %v35, 112
  %v312 = vpop.permute.xlu0 %311
  %vm313 = vcmp.lt.s32.totalorder %v45, 112
  %v314 = vsel %vm313, %v310, %v312
  %v315 = vsel %vm313, %v308, %v310
  %v316 = vsel %vm313, %v306, %v308
  %v317 = vsel %vm313, %v312, %v306
  %s318 = scalar_lea.vmem %s7, 7
  %v319 = vld [vmem:[%s318] ss:$8 sm:$0xf]
  %v321 = vlaneseq
  %v322 = vshrl.u32 %v321, 7
  %v323 = vsub.s32 0, %v322
  %v324 = vrot.slane %v319, %v323
  %v325 = vlaneseq
  %v326 = vshrl.u32 %v325, 7
  %v327 = vsub.s32 1, %v326
  %v328 = vrot.slane %v319, %v327
  %v329 = vlaneseq
  %v330 = vshrl.u32 %v329, 7
  %v331 = vsub.s32 2, %v330
  %v332 = vrot.slane %v319, %v331
  %v333 = vlaneseq
  %v334 = vshrl.u32 %v333, 7
  %v335 = vsub.s32 3, %v334
  %v336 = vrot.slane %v319, %v335
  %v341 = vmul.f32 %v316, %v324
  %v342 = vmul.f32 %v315, %v328
  %v343 = vmul.f32 %v314, %v332
  %v344 = vmul.f32 %v317, %v336
  %345 = vst [vmem:[#allocation2 + $0xe0] sm:$0xff] %v341
  %346 = vst [vmem:[#allocation2 + $0xe8] sm:$0xff] %v342
  %347 = vst [vmem:[#allocation2 + $0xf0] sm:$0xff] %v343
  %348 = vst [vmem:[#allocation2 + $0xf8] sm:$0xff] %v344
  %349 = vrot.lane.b32.xlu0 %v32, 111
  %v350 = vpop.permute.xlu0 %349
  %351 = vrot.lane.b32.xlu0 %v33, 111
  %v352 = vpop.permute.xlu0 %351
  %353 = vrot.lane.b32.xlu0 %v34, 111
  %v354 = vpop.permute.xlu0 %353
  %355 = vrot.lane.b32.xlu0 %v35, 111
  %v356 = vpop.permute.xlu0 %355
  %vm357 = vcmp.lt.s32.totalorder %v45, 111
  %v358 = vsel %vm357, %v354, %v356
  %v359 = vsel %vm357, %v352, %v354
  %v360 = vsel %vm357, %v350, %v352
  %v361 = vsel %vm357, %v356, %v350
  %s362 = scalar_lea.vmem %s7, 32
  %v363 = vld [vmem:[%s362] ss:$8 sm:$0xf]
  %v365 = vlaneseq
  %v366 = vshrl.u32 %v365, 7
  %v367 = vsub.s32 0, %v366
  %v368 = vrot.slane %v363, %v367
  %v369 = vlaneseq
  %v370 = vshrl.u32 %v369, 7
  %v371 = vsub.s32 1, %v370
  %v372 = vrot.slane %v363, %v371
  %v373 = vlaneseq
  %v374 = vshrl.u32 %v373, 7
  %v375 = vsub.s32 2, %v374
  %v376 = vrot.slane %v363, %v375
  %v377 = vlaneseq
  %v378 = vshrl.u32 %v377, 7
  %v379 = vsub.s32 3, %v378
  %v380 = vrot.slane %v363, %v379
  %v385 = vmul.f32 %v360, %v368
  %v386 = vmul.f32 %v359, %v372
  %v387 = vmul.f32 %v358, %v376
  %v388 = vmul.f32 %v361, %v380
  %389 = vst [vmem:[#allocation2 + $0x100] sm:$0xff] %v385
  %390 = vst [vmem:[#allocation2 + $0x108] sm:$0xff] %v386
  %391 = vst [vmem:[#allocation2 + $0x110] sm:$0xff] %v387
  %392 = vst [vmem:[#allocation2 + $0x118] sm:$0xff] %v388
  %v393 = vld [vmem:[%s1] sm:$0xff]
  %v394 = vld [vmem:[#allocation2] sm:$0xff]
  %v395 = vld [vmem:[#allocation2 + $0x8] sm:$0xff]
  %v396 = vld [vmem:[#allocation2 + $0x10] sm:$0xff]
  %v397 = vld [vmem:[#allocation2 + $0x18] sm:$0xff]
  %v398 = vld [vmem:[#allocation2 + $0x20] sm:$0xff]
  %v399 = vld [vmem:[#allocation2 + $0x28] sm:$0xff]
  %v400 = vld [vmem:[#allocation2 + $0x30] sm:$0xff]
  %v401 = vld [vmem:[#allocation2 + $0x38] sm:$0xff]
  %v402 = vld [vmem:[#allocation2 + $0x40] sm:$0xff]
  %v403 = vld [vmem:[#allocation2 + $0x48] sm:$0xff]
  %v404 = vld [vmem:[#allocation2 + $0x50] sm:$0xff]
  %v405 = vld [vmem:[#allocation2 + $0x58] sm:$0xff]
  %v406 = vld [vmem:[#allocation2 + $0x60] sm:$0xff]
  %v407 = vld [vmem:[#allocation2 + $0x68] sm:$0xff]
  %v408 = vld [vmem:[#allocation2 + $0x70] sm:$0xff]
  %v409 = vld [vmem:[#allocation2 + $0x78] sm:$0xff]
  %v410 = vld [vmem:[#allocation2 + $0x80] sm:$0xff]
  %v411 = vld [vmem:[#allocation2 + $0x88] sm:$0xff]
  %v412 = vld [vmem:[#allocation2 + $0x90] sm:$0xff]
  %v413 = vld [vmem:[#allocation2 + $0x98] sm:$0xff]
  %v414 = vld [vmem:[#allocation2 + $0xa0] sm:$0xff]
  %v415 = vld [vmem:[#allocation2 + $0xa8] sm:$0xff]
  %v416 = vld [vmem:[#allocation2 + $0xb0] sm:$0xff]
  %v417 = vld [vmem:[#allocation2 + $0xb8] sm:$0xff]
  %v418 = vld [vmem:[#allocation2 + $0xc0] sm:$0xff]
  %v419 = vld [vmem:[#allocation2 + $0xc8] sm:$0xff]
  %v420 = vld [vmem:[#allocation2 + $0xd0] sm:$0xff]
  %v421 = vld [vmem:[#allocation2 + $0xd8] sm:$0xff]
  %v422 = vld [vmem:[#allocation2 + $0xe0] sm:$0xff]
  %v423 = vld [vmem:[#allocation2 + $0xe8] sm:$0xff]
  %v424 = vld [vmem:[#allocation2 + $0xf0] sm:$0xff]
  %v425 = vld [vmem:[#allocation2 + $0xf8] sm:$0xff]
  %v426 = vld [vmem:[#allocation2 + $0x100] sm:$0xff]
  %v427 = vld [vmem:[#allocation2 + $0x108] sm:$0xff]
  %v428 = vld [vmem:[#allocation2 + $0x110] sm:$0xff]
  %v429 = vld [vmem:[#allocation2 + $0x118] sm:$0xff]
  %vm430 = vcmask 588800
  %v432 = vsel %vm430, %v393, 0
  %434 = vmatprep.subr.mxu0 0.0
  %435 = vmatpush1.msra.mxu0 0.0
  %436 = vmatprep.subr.mxu0 0.0
  %437 = vmatpush1.msra.mxu0 0.0
  %438 = vmatprep.subr.mxu0 0.0
  %439 = vmatpush1.msra.mxu0 0.0
  %440 = vmatprep.subr.mxu0 0.0
  %441 = vmatpush1.msra.mxu0 0.0
  %442 = vmatprep.subr.mxu0 0.0
  %443 = vmatpush1.msra.mxu0 0.0
  %444 = vmatprep.subr.mxu0 0.0
  %445 = vmatpush1.msra.mxu0 0.0
  %446 = vmatprep.subr.mxu0 0.0
  %447 = vmatpush1.msra.mxu0 0.0
  %448 = vmatprep.subr.mxu0 %v427
  %449 = vmatpush1.msra.mxu0 %v426
  %450 = vmatprep.subr.mxu0 %v423
  %451 = vmatpush1.msra.mxu0 %v422
  %452 = vmatprep.subr.mxu0 %v419
  %453 = vmatpush1.msra.mxu0 %v418
  %454 = vmatprep.subr.mxu0 %v415
  %455 = vmatpush1.msra.mxu0 %v414
  %456 = vmatprep.subr.mxu0 %v411
  %457 = vmatpush1.msra.mxu0 %v410
  %458 = vmatprep.subr.mxu0 %v407
  %459 = vmatpush1.msra.mxu0 %v406
  %460 = vmatprep.subr.mxu0 %v403
  %461 = vmatpush1.msra.mxu0 %v402
  %462 = vmatprep.subr.mxu0 %v399
  %463 = vmatpush1.msra.mxu0 %v398
  %464 = vmatprep.subr.mxu0 %v395
  %465 = vmatpush1.msra.mxu0 %v394
  %466 = vmatprep.subr.mxu0 0.0
  %467 = vmatpush2.msra.mxu0 0.0
  %468 = vmatprep.subr.mxu0 0.0
  %469 = vmatpush2.msra.mxu0 0.0
  %470 = vmatprep.subr.mxu0 0.0
  %471 = vmatpush2.msra.mxu0 0.0
  %472 = vmatprep.subr.mxu0 0.0
  %473 = vmatpush2.msra.mxu0 0.0
  %474 = vmatprep.subr.mxu0 0.0
  %475 = vmatpush2.msra.mxu0 0.0
  %476 = vmatprep.subr.mxu0 0.0
  %477 = vmatpush2.msra.mxu0 0.0
  %478 = vmatprep.subr.mxu0 0.0
  %479 = vmatpush2.msra.mxu0 0.0
  %480 = vmatprep.subr.mxu0 0.0
  %481 = vmatpush2.msra.mxu0 0.0
  %482 = vmatprep.subr.mxu0 0.0
  %483 = vmatpush2.msra.mxu0 0.0
  %484 = vmatprep.subr.mxu0 0.0
  %485 = vmatpush2.msra.mxu0 0.0
  %486 = vmatprep.subr.mxu0 0.0
  %487 = vmatpush2.msra.mxu0 0.0
  %488 = vmatprep.subr.mxu0 0.0
  %489 = vmatpush2.msra.mxu0 0.0
  %490 = vmatprep.subr.mxu0 0.0
  %491 = vmatpush2.msra.mxu0 0.0
  %492 = vmatprep.subr.mxu0 0.0
  %493 = vmatpush2.msra.mxu0 0.0
  %494 = vmatprep.subr.mxu0 0.0
  %495 = vmatpush2.msra.mxu0 0.0
  %496 = vmatprep.subr.mxu0 0.0
  %497 = vmatpush2.msra.mxu0 0.0
  %498 = vmatprep.mubr.f32.mxu0 0.0
  %499 = vmatmul.mubr.f32.gmra.mxu0 %v432
  %v500 = vpop.f32.mrf.mxu0
  %v501 = vadd.f32 0.0, %v500
  %v502 = vpop.f32.mrf.mxu0
  %v503 = vadd.f32 0.0, %v502
  %504 = vdwg.mxu0
  %505 = vmatprep.subr.mxu0 0.0
  %506 = vmatpush1.msra.mxu0 0.0
  %507 = vmatprep.subr.mxu0 0.0
  %508 = vmatpush1.msra.mxu0 0.0
  %509 = vmatprep.subr.mxu0 0.0
  %510 = vmatpush1.msra.mxu0 0.0
  %511 = vmatprep.subr.mxu0 0.0
  %512 = vmatpush1.msra.mxu0 0.0
  %513 = vmatprep.subr.mxu0 0.0
  %514 = vmatpush1.msra.mxu0 0.0
  %515 = vmatprep.subr.mxu0 0.0
  %516 = vmatpush1.msra.mxu0 0.0
  %517 = vmatprep.subr.mxu0 0.0
  %518 = vmatpush1.msra.mxu0 0.0
  %519 = vmatprep.subr.mxu0 %v429
  %520 = vmatpush1.msra.mxu0 %v428
  %521 = vmatprep.subr.mxu0 %v425
  %522 = vmatpush1.msra.mxu0 %v424
  %523 = vmatprep.subr.mxu0 %v421
  %524 = vmatpush1.msra.mxu0 %v420
  %525 = vmatprep.subr.mxu0 %v417
  %526 = vmatpush1.msra.mxu0 %v416
  %527 = vmatprep.subr.mxu0 %v413
  %528 = vmatpush1.msra.mxu0 %v412
  %529 = vmatprep.subr.mxu0 %v409
  %530 = vmatpush1.msra.mxu0 %v408
  %531 = vmatprep.subr.mxu0 %v405
  %532 = vmatpush1.msra.mxu0 %v404
  %533 = vmatprep.subr.mxu0 %v401
  %534 = vmatpush1.msra.mxu0 %v400
  %535 = vmatprep.subr.mxu0 %v397
  %536 = vmatpush1.msra.mxu0 %v396
  %537 = vmatprep.subr.mxu0 0.0
  %538 = vmatpush2.msra.mxu0 0.0
  %539 = vmatprep.subr.mxu0 0.0
  %540 = vmatpush2.msra.mxu0 0.0
  %541 = vmatprep.subr.mxu0 0.0
  %542 = vmatpush2.msra.mxu0 0.0
  %543 = vmatprep.subr.mxu0 0.0
  %544 = vmatpush2.msra.mxu0 0.0
  %545 = vmatprep.subr.mxu0 0.0
  %546 = vmatpush2.msra.mxu0 0.0
  %547 = vmatprep.subr.mxu0 0.0
  %548 = vmatpush2.msra.mxu0 0.0
  %549 = vmatprep.subr.mxu0 0.0
  %550 = vmatpush2.msra.mxu0 0.0
  %551 = vmatprep.subr.mxu0 0.0
  %552 = vmatpush2.msra.mxu0 0.0
  %553 = vmatprep.subr.mxu0 0.0
  %554 = vmatpush2.msra.mxu0 0.0
  %555 = vmatprep.subr.mxu0 0.0
  %556 = vmatpush2.msra.mxu0 0.0
  %557 = vmatprep.subr.mxu0 0.0
  %558 = vmatpush2.msra.mxu0 0.0
  %559 = vmatprep.subr.mxu0 0.0
  %560 = vmatpush2.msra.mxu0 0.0
  %561 = vmatprep.subr.mxu0 0.0
  %562 = vmatpush2.msra.mxu0 0.0
  %563 = vmatprep.subr.mxu0 0.0
  %564 = vmatpush2.msra.mxu0 0.0
  %565 = vmatprep.subr.mxu0 0.0
  %566 = vmatpush2.msra.mxu0 0.0
  %567 = vmatprep.subr.mxu0 0.0
  %568 = vmatpush2.msra.mxu0 0.0
  %569 = vmatprep.mubr.f32.mxu0 0.0
  %570 = vmatmul.mubr.f32.gmra.mxu0 %v432
  %v571 = vpop.f32.mrf.mxu0
  %v572 = vadd.f32 0.0, %v571
  %v573 = vpop.f32.mrf.mxu0
  %v574 = vadd.f32 0.0, %v573
  %575 = vdwg.mxu0
  %v576 = vld [vmem:[%s3] sm:$0xff]
  %v577 = vld [vmem:[%s4] sm:$0xff]
  %v578 = vadd.f32 %v501, %v503
  %v579 = vadd.f32 %v578, %v572
  %v580 = vadd.f32 %v579, %v574
  %581 = vadd.xlane.f32.xlu0 %v580
  %v582 = vpop.xlane.xlu0 %581
  %v583 = vmul.f32 %v501, %v501
  %v584 = vmul.f32 %v503, %v503
  %v585 = vmul.f32 %v572, %v572
  %v586 = vmul.f32 %v574, %v574
  %v587 = vadd.f32 %v583, %v584
  %v588 = vadd.f32 %v587, %v585
  %v589 = vadd.f32 %v588, %v586
  %590 = vadd.xlane.f32.xlu0 %v589
  %v591 = vpop.xlane.xlu0 %590
  %v592 = vmul.f32 %v582, 0.001953125
  %v593 = vmul.f32 %v591, 0.001953125
  %v594 = vmul.f32 %v592, %v592
  %v595 = vsub.f32 %v593, %v594
  %v596 = vadd.f32 %v595, 1e-05
  %v597 = vrsqrt.pop %v596
  %v598 = vmul.f32 %v576, %v597
  %v599 = vsub.f32 %v501, %v592
  %v600 = vsub.f32 %v503, %v592
  %v601 = vsub.f32 %v572, %v592
  %v602 = vsub.f32 %v574, %v592
  %604 = vset.pattern.permute.xlu0 0
  %605 = vperm.xlu0 %604, %v598
  %v606 = vpop.permute.xlu0 %605
  %v608 = vmul.f32 %v599, %v606
  %v609 = vmul.f32 %v600, %v606
  %v610 = vmul.f32 %v601, %v606
  %v611 = vmul.f32 %v602, %v606
  %613 = vset.pattern.permute.xlu0 0
  %614 = vperm.xlu0 %613, %v577
  %v615 = vpop.permute.xlu0 %614
  %v617 = vadd.f32 %v608, %v615
  %v618 = vadd.f32 %v609, %v615
  %v619 = vadd.f32 %v610, %v615
  %v620 = vadd.f32 %v611, %v615
  %vm621 = vcmp.ge.f32.partialorder %v617, 0.0
  %vm622 = vcmp.ge.f32.partialorder %v618, 0.0
  %vm623 = vcmp.ge.f32.partialorder %v619, 0.0
  %vm624 = vcmp.ge.f32.partialorder %v620, 0.0
  %v625 = vmul.f32 %v617, 0.2
  %v626 = vmul.f32 %v618, 0.2
  %v627 = vmul.f32 %v619, 0.2
  %v628 = vmul.f32 %v620, 0.2
  %v629 = vsel %vm621, %v617, %v625
  %v630 = vsel %vm622, %v618, %v626
  %v631 = vsel %vm623, %v619, %v627
  %v632 = vsel %vm624, %v620, %v628
  %633 = vrot.lane.b32.xlu0 %v629, 17
  %v634 = vpop.permute.xlu0 %633
  %635 = vrot.lane.b32.xlu0 %v630, 17
  %v636 = vpop.permute.xlu0 %635
  %637 = vrot.lane.b32.xlu0 %v631, 17
  %v638 = vpop.permute.xlu0 %637
  %639 = vrot.lane.b32.xlu0 %v632, 17
  %v640 = vpop.permute.xlu0 %639
  %v641 = vsel %vm46, %v638, %v640
  %v642 = vsel %vm46, %v636, %v638
  %v643 = vsel %vm46, %v634, %v636
  %v644 = vsel %vm46, %v640, %v634
  %v645 = vld [vmem:[%s7] ss:$8 sm:$0xf]
  %v647 = vlaneseq
  %v648 = vshrl.u32 %v647, 7
  %v649 = vsub.s32 0, %v648
  %v650 = vrot.slane %v645, %v649
  %v651 = vlaneseq
  %v652 = vshrl.u32 %v651, 7
  %v653 = vsub.s32 1, %v652
  %v654 = vrot.slane %v645, %v653
  %v655 = vlaneseq
  %v656 = vshrl.u32 %v655, 7
  %v657 = vsub.s32 2, %v656
  %v658 = vrot.slane %v645, %v657
  %v659 = vlaneseq
  %v660 = vshrl.u32 %v659, 7
  %v661 = vsub.s32 3, %v660
  %v662 = vrot.slane %v645, %v661
  %v667 = vmul.f32 %v644, %v650
  %v668 = vmul.f32 %v643, %v654
  %v669 = vmul.f32 %v642, %v658
  %v670 = vmul.f32 %v641, %v662
  %671 = vst [vmem:[#allocation3] sm:$0xff] %v667
  %672 = vst [vmem:[#allocation3 + $0x8] sm:$0xff] %v668
  %673 = vst [vmem:[#allocation3 + $0x10] sm:$0xff] %v669
  %674 = vst [vmem:[#allocation3 + $0x18] sm:$0xff] %v670
  %675 = vrot.lane.b32.xlu0 %v629, 16
  %v676 = vpop.permute.xlu0 %675
  %677 = vrot.lane.b32.xlu0 %v630, 16
  %v678 = vpop.permute.xlu0 %677
  %679 = vrot.lane.b32.xlu0 %v631, 16
  %v680 = vpop.permute.xlu0 %679
  %681 = vrot.lane.b32.xlu0 %v632, 16
  %v682 = vpop.permute.xlu0 %681
  %v683 = vsel %vm89, %v680, %v682
  %v684 = vsel %vm89, %v678, %v680
  %v685 = vsel %vm89, %v676, %v678
  %v686 = vsel %vm89, %v682, %v676
  %v687 = vld [vmem:[%s94] ss:$8 sm:$0xf]
  %v689 = vlaneseq
  %v690 = vshrl.u32 %v689, 7
  %v691 = vsub.s32 0, %v690
  %v692 = vrot.slane %v687, %v691
  %v693 = vlaneseq
  %v694 = vshrl.u32 %v693, 7
  %v695 = vsub.s32 1, %v694
  %v696 = vrot.slane %v687, %v695
  %v697 = vlaneseq
  %v698 = vshrl.u32 %v697, 7
  %v699 = vsub.s32 2, %v698
  %v700 = vrot.slane %v687, %v699
  %v701 = vlaneseq
  %v702 = vshrl.u32 %v701, 7
  %v703 = vsub.s32 3, %v702
  %v704 = vrot.slane %v687, %v703
  %v709 = vmul.f32 %v686, %v692
  %v710 = vmul.f32 %v685, %v696
  %v711 = vmul.f32 %v684, %v700
  %v712 = vmul.f32 %v683, %v704
  %713 = vst [vmem:[#allocation3 + $0x20] sm:$0xff] %v709
  %714 = vst [vmem:[#allocation3 + $0x28] sm:$0xff] %v710
  %715 = vst [vmem:[#allocation3 + $0x30] sm:$0xff] %v711
  %716 = vst [vmem:[#allocation3 + $0x38] sm:$0xff] %v712
  %717 = vrot.lane.b32.xlu0 %v629, 15
  %v718 = vpop.permute.xlu0 %717
  %719 = vrot.lane.b32.xlu0 %v630, 15
  %v720 = vpop.permute.xlu0 %719
  %721 = vrot.lane.b32.xlu0 %v631, 15
  %v722 = vpop.permute.xlu0 %721
  %723 = vrot.lane.b32.xlu0 %v632, 15
  %v724 = vpop.permute.xlu0 %723
  %v725 = vsel %vm133, %v722, %v724
  %v726 = vsel %vm133, %v720, %v722
  %v727 = vsel %vm133, %v718, %v720
  %v728 = vsel %vm133, %v724, %v718
  %v729 = vld [vmem:[%s138] ss:$8 sm:$0xf]
  %v731 = vlaneseq
  %v732 = vshrl.u32 %v731, 7
  %v733 = vsub.s32 0, %v732
  %v734 = vrot.slane %v729, %v733
  %v735 = vlaneseq
  %v736 = vshrl.u32 %v735, 7
  %v737 = vsub.s32 1, %v736
  %v738 = vrot.slane %v729, %v737
  %v739 = vlaneseq
  %v740 = vshrl.u32 %v739, 7
  %v741 = vsub.s32 2, %v740
  %v742 = vrot.slane %v729, %v741
  %v743 = vlaneseq
  %v744 = vshrl.u32 %v743, 7
  %v745 = vsub.s32 3, %v744
  %v746 = vrot.slane %v729, %v745
  %v751 = vmul.f32 %v728, %v734
  %v752 = vmul.f32 %v727, %v738
  %v753 = vmul.f32 %v726, %v742
  %v754 = vmul.f32 %v725, %v746
  %755 = vst [vmem:[#allocation3 + $0x40] sm:$0xff] %v751
  %756 = vst [vmem:[#allocation3 + $0x48] sm:$0xff] %v752
  %757 = vst [vmem:[#allocation3 + $0x50] sm:$0xff] %v753
  %758 = vst [vmem:[#allocation3 + $0x58] sm:$0xff] %v754
  %759 = vrot.lane.b32.xlu0 %v629, 1
  %v760 = vpop.permute.xlu0 %759
  %761 = vrot.lane.b32.xlu0 %v630, 1
  %v762 = vpop.permute.xlu0 %761
  %763 = vrot.lane.b32.xlu0 %v631, 1
  %v764 = vpop.permute.xlu0 %763
  %765 = vrot.lane.b32.xlu0 %v632, 1
  %v766 = vpop.permute.xlu0 %765
  %v767 = vsel %vm177, %v764, %v766
  %v768 = vsel %vm177, %v762, %v764
  %v769 = vsel %vm177, %v760, %v762
  %v770 = vsel %vm177, %v766, %v760
  %v771 = vld [vmem:[%s182] ss:$8 sm:$0xf]
  %v773 = vlaneseq
  %v774 = vshrl.u32 %v773, 7
  %v775 = vsub.s32 0, %v774
  %v776 = vrot.slane %v771, %v775
  %v777 = vlaneseq
  %v778 = vshrl.u32 %v777, 7
  %v779 = vsub.s32 1, %v778
  %v780 = vrot.slane %v771, %v779
  %v781 = vlaneseq
  %v782 = vshrl.u32 %v781, 7
  %v783 = vsub.s32 2, %v782
  %v784 = vrot.slane %v771, %v783
  %v785 = vlaneseq
  %v786 = vshrl.u32 %v785, 7
  %v787 = vsub.s32 3, %v786
  %v788 = vrot.slane %v771, %v787
  %v793 = vmul.f32 %v770, %v776
  %v794 = vmul.f32 %v769, %v780
  %v795 = vmul.f32 %v768, %v784
  %v796 = vmul.f32 %v767, %v788
  %797 = vst [vmem:[#allocation3 + $0x60] sm:$0xff] %v793
  %798 = vst [vmem:[#allocation3 + $0x68] sm:$0xff] %v794
  %799 = vst [vmem:[#allocation3 + $0x70] sm:$0xff] %v795
  %800 = vst [vmem:[#allocation3 + $0x78] sm:$0xff] %v796
  %801 = vst [vmem:[#allocation3 + $0x80] sm:$0xff] %v629
  %802 = vst [vmem:[#allocation3 + $0x88] sm:$0xff] %v630
  %803 = vst [vmem:[#allocation3 + $0x90] sm:$0xff] %v631
  %804 = vst [vmem:[#allocation3 + $0x98] sm:$0xff] %v632
  %805 = vrot.lane.b32.xlu0 %v629, 127
  %v806 = vpop.permute.xlu0 %805
  %807 = vrot.lane.b32.xlu0 %v630, 127
  %v808 = vpop.permute.xlu0 %807
  %809 = vrot.lane.b32.xlu0 %v631, 127
  %v810 = vpop.permute.xlu0 %809
  %811 = vrot.lane.b32.xlu0 %v632, 127
  %v812 = vpop.permute.xlu0 %811
  %v813 = vsel %vm225, %v810, %v812
  %v814 = vsel %vm225, %v808, %v810
  %v815 = vsel %vm225, %v806, %v808
  %v816 = vsel %vm225, %v812, %v806
  %v817 = vld [vmem:[%s230] ss:$8 sm:$0xf]
  %v819 = vlaneseq
  %v820 = vshrl.u32 %v819, 7
  %v821 = vsub.s32 0, %v820
  %v822 = vrot.slane %v817, %v821
  %v823 = vlaneseq
  %v824 = vshrl.u32 %v823, 7
  %v825 = vsub.s32 1, %v824
  %v826 = vrot.slane %v817, %v825
  %v827 = vlaneseq
  %v828 = vshrl.u32 %v827, 7
  %v829 = vsub.s32 2, %v828
  %v830 = vrot.slane %v817, %v829
  %v831 = vlaneseq
  %v832 = vshrl.u32 %v831, 7
  %v833 = vsub.s32 3, %v832
  %v834 = vrot.slane %v817, %v833
  %v839 = vmul.f32 %v815, %v822
  %v840 = vmul.f32 %v814, %v826
  %v841 = vmul.f32 %v813, %v830
  %v842 = vmul.f32 %v816, %v834
  %843 = vst [vmem:[#allocation3 + $0xa0] sm:$0xff] %v839
  %844 = vst [vmem:[#allocation3 + $0xa8] sm:$0xff] %v840
  %845 = vst [vmem:[#allocation3 + $0xb0] sm:$0xff] %v841
  %846 = vst [vmem:[#allocation3 + $0xb8] sm:$0xff] %v842
  %847 = vrot.lane.b32.xlu0 %v629, 113
  %v848 = vpop.permute.xlu0 %847
  %849 = vrot.lane.b32.xlu0 %v630, 113
  %v850 = vpop.permute.xlu0 %849
  %851 = vrot.lane.b32.xlu0 %v631, 113
  %v852 = vpop.permute.xlu0 %851
  %853 = vrot.lane.b32.xlu0 %v632, 113
  %v854 = vpop.permute.xlu0 %853
  %v855 = vsel %vm269, %v852, %v854
  %v856 = vsel %vm269, %v850, %v852
  %v857 = vsel %vm269, %v848, %v850
  %v858 = vsel %vm269, %v854, %v848
  %v859 = vld [vmem:[%s274] ss:$8 sm:$0xf]
  %v861 = vlaneseq
  %v862 = vshrl.u32 %v861, 7
  %v863 = vsub.s32 0, %v862
  %v864 = vrot.slane %v859, %v863
  %v865 = vlaneseq
  %v866 = vshrl.u32 %v865, 7
  %v867 = vsub.s32 1, %v866
  %v868 = vrot.slane %v859, %v867
  %v869 = vlaneseq
  %v870 = vshrl.u32 %v869, 7
  %v871 = vsub.s32 2, %v870
  %v872 = vrot.slane %v859, %v871
  %v873 = vlaneseq
  %v874 = vshrl.u32 %v873, 7
  %v875 = vsub.s32 3, %v874
  %v876 = vrot.slane %v859, %v875
  %v881 = vmul.f32 %v857, %v864
  %v882 = vmul.f32 %v856, %v868
  %v883 = vmul.f32 %v855, %v872
  %v884 = vmul.f32 %v858, %v876
  %885 = vst [vmem:[#allocation3 + $0xc0] sm:$0xff] %v881
  %886 = vst [vmem:[#allocation3 + $0xc8] sm:$0xff] %v882
  %887 = vst [vmem:[#allocation3 + $0xd0] sm:$0xff] %v883
  %888 = vst [vmem:[#allocation3 + $0xd8] sm:$0xff] %v884
  %889 = vrot.lane.b32.xlu0 %v629, 112
  %v890 = vpop.permute.xlu0 %889
  %891 = vrot.lane.b32.xlu0 %v630, 112
  %v892 = vpop.permute.xlu0 %891
  %893 = vrot.lane.b32.xlu0 %v631, 112
  %v894 = vpop.permute.xlu0 %893
  %895 = vrot.lane.b32.xlu0 %v632, 112
  %v896 = vpop.permute.xlu0 %895
  %v897 = vsel %vm313, %v894, %v896
  %v898 = vsel %vm313, %v892, %v894
  %v899 = vsel %vm313, %v890, %v892
  %v900 = vsel %vm313, %v896, %v890
  %v901 = vld [vmem:[%s318] ss:$8 sm:$0xf]
  %v903 = vlaneseq
  %v904 = vshrl.u32 %v903, 7
  %v905 = vsub.s32 0, %v904
  %v906 = vrot.slane %v901, %v905
  %v907 = vlaneseq
  %v908 = vshrl.u32 %v907, 7
  %v909 = vsub.s32 1, %v908
  %v910 = vrot.slane %v901, %v909
  %v911 = vlaneseq
  %v912 = vshrl.u32 %v911, 7
  %v913 = vsub.s32 2, %v912
  %v914 = vrot.slane %v901, %v913
  %v915 = vlaneseq
  %v916 = vshrl.u32 %v915, 7
  %v917 = vsub.s32 3, %v916
  %v918 = vrot.slane %v901, %v917
  %v923 = vmul.f32 %v899, %v906
  %v924 = vmul.f32 %v898, %v910
  %v925 = vmul.f32 %v897, %v914
  %v926 = vmul.f32 %v900, %v918
  %927 = vst [vmem:[#allocation3 + $0xe0] sm:$0xff] %v923
  %928 = vst [vmem:[#allocation3 + $0xe8] sm:$0xff] %v924
  %929 = vst [vmem:[#allocation3 + $0xf0] sm:$0xff] %v925
  %930 = vst [vmem:[#allocation3 + $0xf8] sm:$0xff] %v926
  %931 = vrot.lane.b32.xlu0 %v629, 111
  %v932 = vpop.permute.xlu0 %931
  %933 = vrot.lane.b32.xlu0 %v630, 111
  %v934 = vpop.permute.xlu0 %933
  %935 = vrot.lane.b32.xlu0 %v631, 111
  %v936 = vpop.permute.xlu0 %935
  %937 = vrot.lane.b32.xlu0 %v632, 111
  %v938 = vpop.permute.xlu0 %937
  %v939 = vsel %vm357, %v936, %v938
  %v940 = vsel %vm357, %v934, %v936
  %v941 = vsel %vm357, %v932, %v934
  %v942 = vsel %vm357, %v938, %v932
  %v943 = vld [vmem:[%s362] ss:$8 sm:$0xf]
  %v945 = vlaneseq
  %v946 = vshrl.u32 %v945, 7
  %v947 = vsub.s32 0, %v946
  %v948 = vrot.slane %v943, %v947
  %v949 = vlaneseq
  %v950 = vshrl.u32 %v949, 7
  %v951 = vsub.s32 1, %v950
  %v952 = vrot.slane %v943, %v951
  %v953 = vlaneseq
  %v954 = vshrl.u32 %v953, 7
  %v955 = vsub.s32 2, %v954
  %v956 = vrot.slane %v943, %v955
  %v957 = vlaneseq
  %v958 = vshrl.u32 %v957, 7
  %v959 = vsub.s32 3, %v958
  %v960 = vrot.slane %v943, %v959
  %v965 = vmul.f32 %v941, %v948
  %v966 = vmul.f32 %v940, %v952
  %v967 = vmul.f32 %v939, %v956
  %v968 = vmul.f32 %v942, %v960
  %969 = vst [vmem:[#allocation3 + $0x100] sm:$0xff] %v965
  %970 = vst [vmem:[#allocation3 + $0x108] sm:$0xff] %v966
  %971 = vst [vmem:[#allocation3 + $0x110] sm:$0xff] %v967
  %972 = vst [vmem:[#allocation3 + $0x118] sm:$0xff] %v968
  %v973 = vld [vmem:[%s2] sm:$0xff]
  %v974 = vld [vmem:[#allocation3] sm:$0xff]
  %v975 = vld [vmem:[#allocation3 + $0x8] sm:$0xff]
  %v976 = vld [vmem:[#allocation3 + $0x10] sm:$0xff]
  %v977 = vld [vmem:[#allocation3 + $0x18] sm:$0xff]
  %v978 = vld [vmem:[#allocation3 + $0x20] sm:$0xff]
  %v979 = vld [vmem:[#allocation3 + $0x28] sm:$0xff]
  %v980 = vld [vmem:[#allocation3 + $0x30] sm:$0xff]
  %v981 = vld [vmem:[#allocation3 + $0x38] sm:$0xff]
  %v982 = vld [vmem:[#allocation3 + $0x40] sm:$0xff]
  %v983 = vld [vmem:[#allocation3 + $0x48] sm:$0xff]
  %v984 = vld [vmem:[#allocation3 + $0x50] sm:$0xff]
  %v985 = vld [vmem:[#allocation3 + $0x58] sm:$0xff]
  %v986 = vld [vmem:[#allocation3 + $0x60] sm:$0xff]
  %v987 = vld [vmem:[#allocation3 + $0x68] sm:$0xff]
  %v988 = vld [vmem:[#allocation3 + $0x70] sm:$0xff]
  %v989 = vld [vmem:[#allocation3 + $0x78] sm:$0xff]
  %v990 = vld [vmem:[#allocation3 + $0x80] sm:$0xff]
  %v991 = vld [vmem:[#allocation3 + $0x88] sm:$0xff]
  %v992 = vld [vmem:[#allocation3 + $0x90] sm:$0xff]
  %v993 = vld [vmem:[#allocation3 + $0x98] sm:$0xff]
  %v994 = vld [vmem:[#allocation3 + $0xa0] sm:$0xff]
  %v995 = vld [vmem:[#allocation3 + $0xa8] sm:$0xff]
  %v996 = vld [vmem:[#allocation3 + $0xb0] sm:$0xff]
  %v997 = vld [vmem:[#allocation3 + $0xb8] sm:$0xff]
  %v998 = vld [vmem:[#allocation3 + $0xc0] sm:$0xff]
  %v999 = vld [vmem:[#allocation3 + $0xc8] sm:$0xff]
  %v1000 = vld [vmem:[#allocation3 + $0xd0] sm:$0xff]
  %v1001 = vld [vmem:[#allocation3 + $0xd8] sm:$0xff]
  %v1002 = vld [vmem:[#allocation3 + $0xe0] sm:$0xff]
  %v1003 = vld [vmem:[#allocation3 + $0xe8] sm:$0xff]
  %v1004 = vld [vmem:[#allocation3 + $0xf0] sm:$0xff]
  %v1005 = vld [vmem:[#allocation3 + $0xf8] sm:$0xff]
  %v1006 = vld [vmem:[#allocation3 + $0x100] sm:$0xff]
  %v1007 = vld [vmem:[#allocation3 + $0x108] sm:$0xff]
  %v1008 = vld [vmem:[#allocation3 + $0x110] sm:$0xff]
  %v1009 = vld [vmem:[#allocation3 + $0x118] sm:$0xff]
  %v1011 = vsel %vm430, %v973, 0
  %1013 = vmatprep.subr.mxu0 0.0
  %1014 = vmatpush1.msra.mxu0 0.0
  %1015 = vmatprep.subr.mxu0 0.0
  %1016 = vmatpush1.msra.mxu0 0.0
  %1017 = vmatprep.subr.mxu0 0.0
  %1018 = vmatpush1.msra.mxu0 0.0
  %1019 = vmatprep.subr.mxu0 0.0
  %1020 = vmatpush1.msra.mxu0 0.0
  %1021 = vmatprep.subr.mxu0 0.0
  %1022 = vmatpush1.msra.mxu0 0.0
  %1023 = vmatprep.subr.mxu0 0.0
  %1024 = vmatpush1.msra.mxu0 0.0
  %1025 = vmatprep.subr.mxu0 0.0
  %1026 = vmatpush1.msra.mxu0 0.0
  %1027 = vmatprep.subr.mxu0 %v1007
  %1028 = vmatpush1.msra.mxu0 %v1006
  %1029 = vmatprep.subr.mxu0 %v1003
  %1030 = vmatpush1.msra.mxu0 %v1002
  %1031 = vmatprep.subr.mxu0 %v999
  %1032 = vmatpush1.msra.mxu0 %v998
  %1033 = vmatprep.subr.mxu0 %v995
  %1034 = vmatpush1.msra.mxu0 %v994
  %1035 = vmatprep.subr.mxu0 %v991
  %1036 = vmatpush1.msra.mxu0 %v990
  %1037 = vmatprep.subr.mxu0 %v987
  %1038 = vmatpush1.msra.mxu0 %v986
  %1039 = vmatprep.subr.mxu0 %v983
  %1040 = vmatpush1.msra.mxu0 %v982
  %1041 = vmatprep.subr.mxu0 %v979
  %1042 = vmatpush1.msra.mxu0 %v978
  %1043 = vmatprep.subr.mxu0 %v975
  %1044 = vmatpush1.msra.mxu0 %v974
  %1045 = vmatprep.subr.mxu0 0.0
  %1046 = vmatpush2.msra.mxu0 0.0
  %1047 = vmatprep.subr.mxu0 0.0
  %1048 = vmatpush2.msra.mxu0 0.0
  %1049 = vmatprep.subr.mxu0 0.0
  %1050 = vmatpush2.msra.mxu0 0.0
  %1051 = vmatprep.subr.mxu0 0.0
  %1052 = vmatpush2.msra.mxu0 0.0
  %1053 = vmatprep.subr.mxu0 0.0
  %1054 = vmatpush2.msra.mxu0 0.0
  %1055 = vmatprep.subr.mxu0 0.0
  %1056 = vmatpush2.msra.mxu0 0.0
  %1057 = vmatprep.subr.mxu0 0.0
  %1058 = vmatpush2.msra.mxu0 0.0
  %1059 = vmatprep.subr.mxu0 0.0
  %1060 = vmatpush2.msra.mxu0 0.0
  %1061 = vmatprep.subr.mxu0 0.0
  %1062 = vmatpush2.msra.mxu0 0.0
  %1063 = vmatprep.subr.mxu0 0.0
  %1064 = vmatpush2.msra.mxu0 0.0
  %1065 = vmatprep.subr.mxu0 0.0
  %1066 = vmatpush2.msra.mxu0 0.0
  %1067 = vmatprep.subr.mxu0 0.0
  %1068 = vmatpush2.msra.mxu0 0.0
  %1069 = vmatprep.subr.mxu0 0.0
  %1070 = vmatpush2.msra.mxu0 0.0
  %1071 = vmatprep.subr.mxu0 0.0
  %1072 = vmatpush2.msra.mxu0 0.0
  %1073 = vmatprep.subr.mxu0 0.0
  %1074 = vmatpush2.msra.mxu0 0.0
  %1075 = vmatprep.subr.mxu0 0.0
  %1076 = vmatpush2.msra.mxu0 0.0
  %1077 = vmatprep.mubr.f32.mxu0 0.0
  %1078 = vmatmul.mubr.f32.gmra.mxu0 %v1011
  %v1079 = vpop.f32.mrf.mxu0
  %v1080 = vadd.f32 0.0, %v1079
  %v1081 = vpop.f32.mrf.mxu0
  %v1082 = vadd.f32 0.0, %v1081
  %1083 = vdwg.mxu0
  %1084 = vmatprep.subr.mxu0 0.0
  %1085 = vmatpush1.msra.mxu0 0.0
  %1086 = vmatprep.subr.mxu0 0.0
  %1087 = vmatpush1.msra.mxu0 0.0
  %1088 = vmatprep.subr.mxu0 0.0
  %1089 = vmatpush1.msra.mxu0 0.0
  %1090 = vmatprep.subr.mxu0 0.0
  %1091 = vmatpush1.msra.mxu0 0.0
  %1092 = vmatprep.subr.mxu0 0.0
  %1093 = vmatpush1.msra.mxu0 0.0
  %1094 = vmatprep.subr.mxu0 0.0
  %1095 = vmatpush1.msra.mxu0 0.0
  %1096 = vmatprep.subr.mxu0 0.0
  %1097 = vmatpush1.msra.mxu0 0.0
  %1098 = vmatprep.subr.mxu0 %v1009
  %1099 = vmatpush1.msra.mxu0 %v1008
  %1100 = vmatprep.subr.mxu0 %v1005
  %1101 = vmatpush1.msra.mxu0 %v1004
  %1102 = vmatprep.subr.mxu0 %v1001
  %1103 = vmatpush1.msra.mxu0 %v1000
  %1104 = vmatprep.subr.mxu0 %v997
  %1105 = vmatpush1.msra.mxu0 %v996
  %1106 = vmatprep.subr.mxu0 %v993
  %1107 = vmatpush1.msra.mxu0 %v992
  %1108 = vmatprep.subr.mxu0 %v989
  %1109 = vmatpush1.msra.mxu0 %v988
  %1110 = vmatprep.subr.mxu0 %v985
  %1111 = vmatpush1.msra.mxu0 %v984
  %1112 = vmatprep.subr.mxu0 %v981
  %1113 = vmatpush1.msra.mxu0 %v980
  %1114 = vmatprep.subr.mxu0 %v977
  %1115 = vmatpush1.msra.mxu0 %v976
  %1116 = vmatprep.subr.mxu0 0.0
  %1117 = vmatpush2.msra.mxu0 0.0
  %1118 = vmatprep.subr.mxu0 0.0
  %1119 = vmatpush2.msra.mxu0 0.0
  %1120 = vmatprep.subr.mxu0 0.0
  %1121 = vmatpush2.msra.mxu0 0.0
  %1122 = vmatprep.subr.mxu0 0.0
  %1123 = vmatpush2.msra.mxu0 0.0
  %1124 = vmatprep.subr.mxu0 0.0
  %1125 = vmatpush2.msra.mxu0 0.0
  %1126 = vmatprep.subr.mxu0 0.0
  %1127 = vmatpush2.msra.mxu0 0.0
  %1128 = vmatprep.subr.mxu0 0.0
  %1129 = vmatpush2.msra.mxu0 0.0
  %1130 = vmatprep.subr.mxu0 0.0
  %1131 = vmatpush2.msra.mxu0 0.0
  %1132 = vmatprep.subr.mxu0 0.0
  %1133 = vmatpush2.msra.mxu0 0.0
  %1134 = vmatprep.subr.mxu0 0.0
  %1135 = vmatpush2.msra.mxu0 0.0
  %1136 = vmatprep.subr.mxu0 0.0
  %1137 = vmatpush2.msra.mxu0 0.0
  %1138 = vmatprep.subr.mxu0 0.0
  %1139 = vmatpush2.msra.mxu0 0.0
  %1140 = vmatprep.subr.mxu0 0.0
  %1141 = vmatpush2.msra.mxu0 0.0
  %1142 = vmatprep.subr.mxu0 0.0
  %1143 = vmatpush2.msra.mxu0 0.0
  %1144 = vmatprep.subr.mxu0 0.0
  %1145 = vmatpush2.msra.mxu0 0.0
  %1146 = vmatprep.subr.mxu0 0.0
  %1147 = vmatpush2.msra.mxu0 0.0
  %1148 = vmatprep.mubr.f32.mxu0 0.0
  %1149 = vmatmul.mubr.f32.gmra.mxu0 %v1011
  %v1150 = vpop.f32.mrf.mxu0
  %v1151 = vadd.f32 0.0, %v1150
  %v1152 = vpop.f32.mrf.mxu0
  %v1153 = vadd.f32 0.0, %v1152
  %1154 = vdwg.mxu0
  %v1155 = vld [vmem:[%s5] sm:$0xff]
  %v1156 = vld [vmem:[%s6] sm:$0xff]
  %v1157 = vadd.f32 %v1080, %v1082
  %v1158 = vadd.f32 %v1157, %v1151
  %v1159 = vadd.f32 %v1158, %v1153
  %1160 = vadd.xlane.f32.xlu0 %v1159
  %v1161 = vpop.xlane.xlu0 %1160
  %v1162 = vmul.f32 %v1080, %v1080
  %v1163 = vmul.f32 %v1082, %v1082
  %v1164 = vmul.f32 %v1151, %v1151
  %v1165 = vmul.f32 %v1153, %v1153
  %v1166 = vadd.f32 %v1162, %v1163
  %v1167 = vadd.f32 %v1166, %v1164
  %v1168 = vadd.f32 %v1167, %v1165
  %1169 = vadd.xlane.f32.xlu0 %v1168
  %v1170 = vpop.xlane.xlu0 %1169
  %v1171 = vmul.f32 %v1161, 0.001953125
  %v1172 = vmul.f32 %v1170, 0.001953125
  %v1173 = vmul.f32 %v1171, %v1171
  %v1174 = vsub.f32 %v1172, %v1173
  %v1175 = vadd.f32 %v1174, 1e-05
  %v1176 = vrsqrt.pop %v1175
  %v1177 = vmul.f32 %v1155, %v1176
  %v1178 = vsub.f32 %v1080, %v1171
  %v1179 = vsub.f32 %v1082, %v1171
  %v1180 = vsub.f32 %v1151, %v1171
  %v1181 = vsub.f32 %v1153, %v1171
  %1183 = vset.pattern.permute.xlu0 0
  %1184 = vperm.xlu0 %1183, %v1177
  %v1185 = vpop.permute.xlu0 %1184
  %v1187 = vmul.f32 %v1178, %v1185
  %v1188 = vmul.f32 %v1179, %v1185
  %v1189 = vmul.f32 %v1180, %v1185
  %v1190 = vmul.f32 %v1181, %v1185
  %1192 = vset.pattern.permute.xlu0 0
  %1193 = vperm.xlu0 %1192, %v1156
  %v1194 = vpop.permute.xlu0 %1193
  %v1196 = vadd.f32 %v1187, %v1194
  %v1197 = vadd.f32 %v1188, %v1194
  %v1198 = vadd.f32 %v1189, %v1194
  %v1199 = vadd.f32 %v1190, %v1194
  %vm1200 = vcmp.ge.f32.partialorder %v1196, 0.0
  %vm1201 = vcmp.ge.f32.partialorder %v1197, 0.0
  %vm1202 = vcmp.ge.f32.partialorder %v1198, 0.0
  %vm1203 = vcmp.ge.f32.partialorder %v1199, 0.0
  %v1204 = vmul.f32 %v1196, 0.2
  %v1205 = vmul.f32 %v1197, 0.2
  %v1206 = vmul.f32 %v1198, 0.2
  %v1207 = vmul.f32 %v1199, 0.2
  %v1208 = vsel %vm1200, %v1196, %v1204
  %v1209 = vsel %vm1201, %v1197, %v1205
  %v1210 = vsel %vm1202, %v1198, %v1206
  %v1211 = vsel %vm1203, %v1199, %v1207
  %v1212 = vld [vmem:[%s8] sm:$0xff]
  %v1213 = vld [vmem:[%s8 + $0x8] sm:$0xff]
  %v1214 = vld [vmem:[%s8 + $0x10] sm:$0xff]
  %v1215 = vld [vmem:[%s8 + $0x18] sm:$0xff]
  %v1216 = vld [vmem:[%s8 + $0x20] sm:$0xff]
  %v1217 = vld [vmem:[%s8 + $0x28] sm:$0xff]
  %v1218 = vld [vmem:[%s8 + $0x30] sm:$0xff]
  %v1219 = vld [vmem:[%s8 + $0x38] sm:$0xff]
  %v1220 = vld [vmem:[%s8 + $0x40] sm:$0xff]
  %v1221 = vld [vmem:[%s8 + $0x48] sm:$0xff]
  %v1222 = vld [vmem:[%s8 + $0x50] sm:$0xff]
  %v1223 = vld [vmem:[%s8 + $0x58] sm:$0xff]
  %v1224 = vld [vmem:[%s8 + $0x60] sm:$0xff]
  %v1225 = vld [vmem:[%s8 + $0x68] sm:$0xff]
  %v1226 = vld [vmem:[%s8 + $0x70] sm:$0xff]
  %v1227 = vld [vmem:[%s8 + $0x78] sm:$0xff]
  %v1228 = vld [vmem:[%s8 + $0x80] sm:$0xff]
  %v1229 = vld [vmem:[%s8 + $0x88] sm:$0xff]
  %v1230 = vld [vmem:[%s8 + $0x90] sm:$0xff]
  %v1231 = vld [vmem:[%s8 + $0x98] sm:$0xff]
  %v1232 = vld [vmem:[%s8 + $0xa0] sm:$0xff]
  %v1233 = vld [vmem:[%s8 + $0xa8] sm:$0xff]
  %v1234 = vld [vmem:[%s8 + $0xb0] sm:$0xff]
  %v1235 = vld [vmem:[%s8 + $0xb8] sm:$0xff]
  %v1236 = vld [vmem:[%s8 + $0xc0] sm:$0xff]
  %v1237 = vld [vmem:[%s8 + $0xc8] sm:$0xff]
  %v1238 = vld [vmem:[%s8 + $0xd0] sm:$0xff]
  %v1239 = vld [vmem:[%s8 + $0xd8] sm:$0xff]
  %v1240 = vld [vmem:[%s8 + $0xe0] sm:$0xff]
  %v1241 = vld [vmem:[%s8 + $0xe8] sm:$0xff]
  %v1242 = vld [vmem:[%s8 + $0xf0] sm:$0xff]
  %v1243 = vld [vmem:[%s8 + $0xf8] sm:$0xff]
  %v1244 = vld [vmem:[%s8 + $0x100] sm:$0xff]
  %v1245 = vld [vmem:[%s8 + $0x108] sm:$0xff]
  %v1246 = vld [vmem:[%s8 + $0x110] sm:$0xff]
  %v1247 = vld [vmem:[%s8 + $0x118] sm:$0xff]
  %v1248 = vld [vmem:[%s8 + $0x120] sm:$0xff]
  %v1249 = vld [vmem:[%s8 + $0x128] sm:$0xff]
  %v1250 = vld [vmem:[%s8 + $0x130] sm:$0xff]
  %v1251 = vld [vmem:[%s8 + $0x138] sm:$0xff]
  %v1252 = vld [vmem:[%s8 + $0x140] sm:$0xff]
  %v1253 = vld [vmem:[%s8 + $0x148] sm:$0xff]
  %v1254 = vld [vmem:[%s8 + $0x150] sm:$0xff]
  %v1255 = vld [vmem:[%s8 + $0x158] sm:$0xff]
  %v1256 = vld [vmem:[%s8 + $0x160] sm:$0xff]
  %v1257 = vld [vmem:[%s8 + $0x168] sm:$0xff]
  %v1258 = vld [vmem:[%s8 + $0x170] sm:$0xff]
  %v1259 = vld [vmem:[%s8 + $0x178] sm:$0xff]
  %v1260 = vld [vmem:[%s8 + $0x180] sm:$0xff]
  %v1261 = vld [vmem:[%s8 + $0x188] sm:$0xff]
  %v1262 = vld [vmem:[%s8 + $0x190] sm:$0xff]
  %v1263 = vld [vmem:[%s8 + $0x198] sm:$0xff]
  %v1264 = vld [vmem:[%s8 + $0x1a0] sm:$0xff]
  %v1265 = vld [vmem:[%s8 + $0x1a8] sm:$0xff]
  %v1266 = vld [vmem:[%s8 + $0x1b0] sm:$0xff]
  %v1267 = vld [vmem:[%s8 + $0x1b8] sm:$0xff]
  %v1268 = vld [vmem:[%s8 + $0x1c0] sm:$0xff]
  %v1269 = vld [vmem:[%s8 + $0x1c8] sm:$0xff]
  %v1270 = vld [vmem:[%s8 + $0x1d0] sm:$0xff]
  %v1271 = vld [vmem:[%s8 + $0x1d8] sm:$0xff]
  %v1272 = vld [vmem:[%s8 + $0x1e0] sm:$0xff]
  %v1273 = vld [vmem:[%s8 + $0x1e8] sm:$0xff]
  %v1274 = vld [vmem:[%s8 + $0x1f0] sm:$0xff]
  %v1275 = vld [vmem:[%s8 + $0x1f8] sm:$0xff]
  %1276 = vmatprep.subr.mxu0 0.0
  %1277 = vmatpush1.msra.mxu0 %v1227
  %1278 = vmatprep.subr.mxu0 0.0
  %1279 = vmatpush1.msra.mxu0 %v1226
  %1280 = vmatprep.subr.mxu0 0.0
  %1281 = vmatpush1.msra.mxu0 %v1225
  %1282 = vmatprep.subr.mxu0 0.0
  %1283 = vmatpush1.msra.mxu0 %v1224
  %1284 = vmatprep.subr.mxu0 0.0
  %1285 = vmatpush1.msra.mxu0 %v1223
  %1286 = vmatprep.subr.mxu0 0.0
  %1287 = vmatpush1.msra.mxu0 %v1222
  %1288 = vmatprep.subr.mxu0 0.0
  %1289 = vmatpush1.msra.mxu0 %v1221
  %1290 = vmatprep.subr.mxu0 0.0
  %1291 = vmatpush1.msra.mxu0 %v1220
  %1292 = vmatprep.subr.mxu0 0.0
  %1293 = vmatpush1.msra.mxu0 %v1219
  %1294 = vmatprep.subr.mxu0 0.0
  %1295 = vmatpush1.msra.mxu0 %v1218
  %1296 = vmatprep.subr.mxu0 0.0
  %1297 = vmatpush1.msra.mxu0 %v1217
  %1298 = vmatprep.subr.mxu0 0.0
  %1299 = vmatpush1.msra.mxu0 %v1216
  %1300 = vmatprep.subr.mxu0 0.0
  %1301 = vmatpush1.msra.mxu0 %v1215
  %1302 = vmatprep.subr.mxu0 0.0
  %1303 = vmatpush1.msra.mxu0 %v1214
  %1304 = vmatprep.subr.mxu0 0.0
  %1305 = vmatpush1.msra.mxu0 %v1213
  %1306 = vmatprep.subr.mxu0 0.0
  %1307 = vmatpush1.msra.mxu0 %v1212
  %1308 = vmatprep.subr.mxu0 0.0
  %1309 = vmatpush2.msra.mxu0 %v1243
  %1310 = vmatprep.subr.mxu0 0.0
  %1311 = vmatpush2.msra.mxu0 %v1242
  %1312 = vmatprep.subr.mxu0 0.0
  %1313 = vmatpush2.msra.mxu0 %v1241
  %1314 = vmatprep.subr.mxu0 0.0
  %1315 = vmatpush2.msra.mxu0 %v1240
  %1316 = vmatprep.subr.mxu0 0.0
  %1317 = vmatpush2.msra.mxu0 %v1239
  %1318 = vmatprep.subr.mxu0 0.0
  %1319 = vmatpush2.msra.mxu0 %v1238
  %1320 = vmatprep.subr.mxu0 0.0
  %1321 = vmatpush2.msra.mxu0 %v1237
  %1322 = vmatprep.subr.mxu0 0.0
  %1323 = vmatpush2.msra.mxu0 %v1236
  %1324 = vmatprep.subr.mxu0 0.0
  %1325 = vmatpush2.msra.mxu0 %v1235
  %1326 = vmatprep.subr.mxu0 0.0
  %1327 = vmatpush2.msra.mxu0 %v1234
  %1328 = vmatprep.subr.mxu0 0.0
  %1329 = vmatpush2.msra.mxu0 %v1233
  %1330 = vmatprep.subr.mxu0 0.0
  %1331 = vmatpush2.msra.mxu0 %v1232
  %1332 = vmatprep.subr.mxu0 0.0
  %1333 = vmatpush2.msra.mxu0 %v1231
  %1334 = vmatprep.subr.mxu0 0.0
  %1335 = vmatpush2.msra.mxu0 %v1230
  %1336 = vmatprep.subr.mxu0 0.0
  %1337 = vmatpush2.msra.mxu0 %v1229
  %1338 = vmatprep.subr.mxu0 0.0
  %1339 = vmatpush2.msra.mxu0 %v1228
  %1340 = vmatprep.mubr.f32.mxu0 %v1209
  %1341 = vmatmul.mubr.f32.gmra.mxu0 %v1208
  %v1342 = vpop.f32.mrf.mxu0
  %v1343 = vadd.f32 0.0, %v1342
  %v1344 = vpop.f32.mrf.mxu0
  %1345 = vdwg.mxu0
  %1346 = vmatprep.subr.mxu0 0.0
  %1347 = vmatpush1.msra.mxu0 %v1259
  %1348 = vmatprep.subr.mxu0 0.0
  %1349 = vmatpush1.msra.mxu0 %v1258
  %1350 = vmatprep.subr.mxu0 0.0
  %1351 = vmatpush1.msra.mxu0 %v1257
  %1352 = vmatprep.subr.mxu0 0.0
  %1353 = vmatpush1.msra.mxu0 %v1256
  %1354 = vmatprep.subr.mxu0 0.0
  %1355 = vmatpush1.msra.mxu0 %v1255
  %1356 = vmatprep.subr.mxu0 0.0
  %1357 = vmatpush1.msra.mxu0 %v1254
  %1358 = vmatprep.subr.mxu0 0.0
  %1359 = vmatpush1.msra.mxu0 %v1253
  %1360 = vmatprep.subr.mxu0 0.0
  %1361 = vmatpush1.msra.mxu0 %v1252
  %1362 = vmatprep.subr.mxu0 0.0
  %1363 = vmatpush1.msra.mxu0 %v1251
  %1364 = vmatprep.subr.mxu0 0.0
  %1365 = vmatpush1.msra.mxu0 %v1250
  %1366 = vmatprep.subr.mxu0 0.0
  %1367 = vmatpush1.msra.mxu0 %v1249
  %1368 = vmatprep.subr.mxu0 0.0
  %1369 = vmatpush1.msra.mxu0 %v1248
  %1370 = vmatprep.subr.mxu0 0.0
  %1371 = vmatpush1.msra.mxu0 %v1247
  %1372 = vmatprep.subr.mxu0 0.0
  %1373 = vmatpush1.msra.mxu0 %v1246
  %1374 = vmatprep.subr.mxu0 0.0
  %1375 = vmatpush1.msra.mxu0 %v1245
  %1376 = vmatprep.subr.mxu0 0.0
  %1377 = vmatpush1.msra.mxu0 %v1244
  %1378 = vmatprep.subr.mxu0 0.0
  %1379 = vmatpush2.msra.mxu0 %v1275
  %1380 = vmatprep.subr.mxu0 0.0
  %1381 = vmatpush2.msra.mxu0 %v1274
  %1382 = vmatprep.subr.mxu0 0.0
  %1383 = vmatpush2.msra.mxu0 %v1273
  %1384 = vmatprep.subr.mxu0 0.0
  %1385 = vmatpush2.msra.mxu0 %v1272
  %1386 = vmatprep.subr.mxu0 0.0
  %1387 = vmatpush2.msra.mxu0 %v1271
  %1388 = vmatprep.subr.mxu0 0.0
  %1389 = vmatpush2.msra.mxu0 %v1270
  %1390 = vmatprep.subr.mxu0 0.0
  %1391 = vmatpush2.msra.mxu0 %v1269
  %1392 = vmatprep.subr.mxu0 0.0
  %1393 = vmatpush2.msra.mxu0 %v1268
  %1394 = vmatprep.subr.mxu0 0.0
  %1395 = vmatpush2.msra.mxu0 %v1267
  %1396 = vmatprep.subr.mxu0 0.0
  %1397 = vmatpush2.msra.mxu0 %v1266
  %1398 = vmatprep.subr.mxu0 0.0
  %1399 = vmatpush2.msra.mxu0 %v1265
  %1400 = vmatprep.subr.mxu0 0.0
  %1401 = vmatpush2.msra.mxu0 %v1264
  %1402 = vmatprep.subr.mxu0 0.0
  %1403 = vmatpush2.msra.mxu0 %v1263
  %1404 = vmatprep.subr.mxu0 0.0
  %1405 = vmatpush2.msra.mxu0 %v1262
  %1406 = vmatprep.subr.mxu0 0.0
  %1407 = vmatpush2.msra.mxu0 %v1261
  %1408 = vmatprep.subr.mxu0 0.0
  %1409 = vmatpush2.msra.mxu0 %v1260
  %1410 = vmatprep.mubr.f32.mxu0 %v1211
  %1411 = vmatmul.mubr.f32.gmra.mxu0 %v1210
  %v1412 = vpop.f32.mrf.mxu0
  %v1413 = vadd.f32 %v1343, %v1412
  %v1414 = vpop.f32.mrf.mxu0
  %1415 = vdwg.mxu0
  %1416 = vst [vmem:[%s9] sm:$0xff] %v1413
  // Predicated region
  $region38: #{agent_conv_block_bn.1} parent=0 // pred_check
    _
  $region39: #{agent_conv_block_bn.1} parent=0 // pred_check_branch
    %1418 = sbr.rel (0) target = $region41
  $region40: #{agent_conv_block_bn.1} parent=0 // pred_region
    _
  $region41: #{agent_conv_block_bn.1} parent=0 // pred_fallthru
    _
  // Predicated region
  $region42: #{agent_conv_block_bn.1} parent=0 // pred_check
    _
  $region43: #{agent_conv_block_bn.1} parent=0 // pred_check_branch
    %1420 = sbr.rel (0) target = $region45
  $region44: #{agent_conv_block_bn.1} parent=0 // pred_region
    _
  $region45: #{agent_conv_block_bn.1} parent=0 // pred_fallthru
    _

</llo_original>
